<compile_context>
chip_gen: v5e
topology: v5e:2x2
jax: 0.10.0
libtpu: 0.0.40
codegen_flags: <defaults>
</compile_context>

<pallas_src>
import functools

import jax
import jax.numpy as jnp
from jax.experimental import pallas as pl
from jax.experimental.pallas import tpu as pltpu

_BN_EPS = 1e-5


def _pick_tile_hw(hw, max_tile=2048):
    """Largest divisor of hw that is <= max_tile (multiple of 8 preferred)."""
    if hw <= max_tile:
        return hw
    for t in range(max_tile, 0, -1):
        if hw % t == 0 and t % 8 == 0:
            return t
    # TODO(synk): pad/mask the ragged tail for awkward H*W instead of this.
    for t in range(max_tile, 0, -1):
        if hw % t == 0:
            return t
    return hw


def _simsiam_kernel(x_ref,
                    w1_ref, g1_ref, b1_ref,
                    w2_ref, g2_ref, b2_ref,
                    w3_ref, g3_ref, b3_ref,
                    wc_ref,
                    o_ref,
                    s1, q1, s2, q2, s3, q3, pooled,
                    *, inv_n, inv_hw):
    phase = pl.program_id(0)
    b = pl.program_id(1)
    t = pl.program_id(2)
    first = jnp.logical_and(b == 0, t == 0)
    last = jnp.logical_and(b == pl.num_programs(1) - 1,
                           t == pl.num_programs(2) - 1)

    x = x_ref[0]  # (TILE_HW, C_in) bf16

    def bn_affine(s_r, q_r, g_r, bb_r):
        # Single-pass batch-norm affine from accumulated sum / sum-of-squares.
        mu = s_r[...] * inv_n
        var = q_r[...] * inv_n - mu * mu
        inv = jax.lax.rsqrt(var + _BN_EPS)
        scale = g_r[...] * inv
        shift = bb_r[...] - mu * scale
        return scale, shift

    # ---------------- phase 0: stats of y1 = x @ w1 ----------------
    @pl.when(phase == 0)
    def _():
        @pl.when(first)
        def _():
            s1[...] = jnp.zeros_like(s1)
            q1[...] = jnp.zeros_like(q1)

        y1 = jnp.dot(x, w1_ref[...], preferred_element_type=jnp.float32)
        s1[...] += jnp.sum(y1, axis=0, keepdims=True)
        q1[...] += jnp.sum(y1 * y1, axis=0, keepdims=True)

    # ------- phase 1: stats of y2 = relu(bn1(y1)) @ w2 --------------
    @pl.when(phase == 1)
    def _():
        @pl.when(first)
        def _():
            s2[...] = jnp.zeros_like(s2)
            q2[...] = jnp.zeros_like(q2)

        sc1, sh1 = bn_affine(s1, q1, g1_ref, b1_ref)
        y1 = jnp.dot(x, w1_ref[...], preferred_element_type=jnp.float32)
        a1 = jnp.maximum(y1 * sc1 + sh1, 0.0).astype(jnp.bfloat16)
        y2 = jnp.dot(a1, w2_ref[...], preferred_element_type=jnp.float32)
        s2[...] += jnp.sum(y2, axis=0, keepdims=True)
        q2[...] += jnp.sum(y2 * y2, axis=0, keepdims=True)

    # -- phase 2: stats of y3 + per-batch pooled y3; finalize output --
    @pl.when(phase == 2)
    def _():
        @pl.when(first)
        def _():
            s3[...] = jnp.zeros_like(s3)
            q3[...] = jnp.zeros_like(q3)
            pooled[...] = jnp.zeros_like(pooled)

        sc1, sh1 = bn_affine(s1, q1, g1_ref, b1_ref)
        sc2, sh2 = bn_affine(s2, q2, g2_ref, b2_ref)
        y1 = jnp.dot(x, w1_ref[...], preferred_element_type=jnp.float32)
        a1 = jnp.maximum(y1 * sc1 + sh1, 0.0).astype(jnp.bfloat16)
        y2 = jnp.dot(a1, w2_ref[...], preferred_element_type=jnp.float32)
        a2 = jnp.maximum(y2 * sc2 + sh2, 0.0).astype(jnp.bfloat16)
        y3 = jnp.dot(a2, w3_ref[...], preferred_element_type=jnp.float32)

        tile_sum = jnp.sum(y3, axis=0, keepdims=True)           # (1, 64)
        s3[...] += tile_sum
        q3[...] += jnp.sum(y3 * y3, axis=0, keepdims=True)

        nb = pooled.shape[0]
        onehot = (jax.lax.broadcasted_iota(jnp.int32, (nb, 1), 0) == b
                  ).astype(jnp.float32)                          # (B, 1)
        pooled[...] += onehot * tile_sum                         # (B, 64)

        @pl.when(last)
        def _():
            sc3, sh3 = bn_affine(s3, q3, g3_ref, b3_ref)
            # per-batch spatial mean of z3 = BN3(y3); classifier folded after.
            pm = pooled[...] * inv_hw                            # (B, 64)
            z = pm * sc3 + sh3                                   # (B, 64)
            v = jnp.dot(z.astype(jnp.bfloat16), wc_ref[...],
                        preferred_element_type=jnp.float32)      # (B, 1)
            o_ref[...] = jnp.concatenate([1.0 - v, v], axis=-1)  # (B, 2)


def simsiam_inference_test(x_nchw, params, *, max_tile_hw=2048):
    """classifier(projector(embbed)) + postprocess_map.  Returns (B, 2) f32."""
    B, C, H, W = x_nchw.shape
    HW = H * W
    N = B * HW
    TILE = _pick_tile_hw(HW, max_tile_hw)
    n_t = HW // TILE

    # NCHW -> (B, HW, C); cast to bf16 fused with the transpose.
    # TODO(synk): ideally the backbone emits NHWC bf16 directly.
    x = jnp.transpose(x_nchw, (0, 2, 3, 1)).reshape(B, HW, C).astype(jnp.bfloat16)

    w1 = params["w1"].astype(jnp.bfloat16)                 # (C, 64)
    w2 = params["w2"].astype(jnp.bfloat16)                 # (64, 64)
    w3 = params["w3"].astype(jnp.bfloat16)                 # (64, 64)
    wc = params["wc"].reshape(-1, 1).astype(jnp.bfloat16)  # (64, 1)
    g1, b1 = params["g1"], params["b1"]
    g2, b2 = params["g2"], params["b2"]
    g3, b3 = params["g3"], params["b3"]
    hidden = w1.shape[1]

    grid = (3, B, n_t)

    in_specs = [
        pl.BlockSpec((1, TILE, C), lambda p, b, t: (b, t, 0)),   # x
        pl.BlockSpec(w1.shape, lambda p, b, t: (0, 0)),
        pl.BlockSpec(g1.shape, lambda p, b, t: (0, 0)),
        pl.BlockSpec(b1.shape, lambda p, b, t: (0, 0)),
        pl.BlockSpec(w2.shape, lambda p, b, t: (0, 0)),
        pl.BlockSpec(g2.shape, lambda p, b, t: (0, 0)),
        pl.BlockSpec(b2.shape, lambda p, b, t: (0, 0)),
        pl.BlockSpec(w3.shape, lambda p, b, t: (0, 0)),
        pl.BlockSpec(g3.shape, lambda p, b, t: (0, 0)),
        pl.BlockSpec(b3.shape, lambda p, b, t: (0, 0)),
        pl.BlockSpec(wc.shape, lambda p, b, t: (0, 0)),
    ]
    out_specs = pl.BlockSpec((B, 2), lambda p, b, t: (0, 0))

    scratch_shapes = (
        [pltpu.VMEM((1, hidden), jnp.float32)] * 6      # s1,q1,s2,q2,s3,q3
        + [pltpu.VMEM((B, hidden), jnp.float32)]        # per-batch pooled y3
    )

    # Explicit VMEM budget (keeps the tile choice safe on v7x's 64 MiB VMEM).
    vmem_bytes = (
        2 * TILE * C * 2                                 # x double-buffered bf16
        + (C * hidden + 2 * hidden * hidden + hidden) * 2 * 2
        + (6 * hidden + B * hidden) * 4
        + 8 * TILE * hidden * 4                          # f32 intermediates
    )
    vmem_limit = int(min(max(2 * vmem_bytes, 16 << 20), 48 << 20))

    kernel = functools.partial(_simsiam_kernel,
                               inv_n=1.0 / float(N),
                               inv_hw=1.0 / float(HW))

    return pl.pallas_call(
        kernel,
        out_shape=jax.ShapeDtypeStruct((B, 2), jnp.float32),
        grid=grid,
        in_specs=in_specs,
        out_specs=out_specs,
        scratch_shapes=scratch_shapes,
        compiler_params=pltpu.CompilerParams(
            dimension_semantics=("arbitrary", "arbitrary", "arbitrary"),
            vmem_limit_bytes=vmem_limit),
    )(x, w1, g1, b1, w2, g2, b2, w3, g3, b3, wc)


def init_params(key, c_in=32, hidden=64, out_dim=64):
    """Synthetic init matching the module's parameter shapes.

    projector: conv1x1 c_in->hidden, hidden->hidden, hidden->out (each + BN);
    classifier: conv1x1 out->1.  Conv weights stored as (C_in, C_out) matmul
    matrices (== PyTorch (C_out, C_in, 1, 1) weight, squeezed & transposed).
    """
    ks = jax.random.split(key, 4)

    def conv_w(k, fan_in, fan_out):
        bound = 1.0 / jnp.sqrt(float(fan_in))
        return jax.random.uniform(k, (fan_in, fan_out), jnp.float32,
                                  minval=-bound, maxval=bound)

    ones = lambda c: jnp.ones((1, c), jnp.float32)    # BN gamma default
    zeros = lambda c: jnp.zeros((1, c), jnp.float32)  # BN beta default

    return dict(
        w1=conv_w(ks[0], c_in, hidden),    g1=ones(hidden),  b1=zeros(hidden),
        w2=conv_w(ks[1], hidden, hidden),  g2=ones(hidden),  b2=zeros(hidden),
        w3=conv_w(ks[2], hidden, out_dim), g3=ones(out_dim), b3=zeros(out_dim),
        wc=conv_w(ks[3], out_dim, 1).reshape(1, out_dim),
    )


def _reference(x_nchw, params):
    """Pure-JAX reference of the same math (per-pixel classifier, then pool)."""
    B, C, H, W = x_nchw.shape
    x = jnp.transpose(x_nchw, (0, 2, 3, 1)).reshape(B * H * W, C)
    half = jnp.bfloat16

    def lin(a, w):
        return jnp.dot(a.astype(half), w.astype(half),
                       preferred_element_type=jnp.float32)

    def bn(y, g, b):
        mu = jnp.mean(y, axis=0, keepdims=True)
        var = jnp.mean((y - mu) ** 2, axis=0, keepdims=True)
        return (y - mu) * jax.lax.rsqrt(var + _BN_EPS) * g + b

    y = jnp.maximum(bn(lin(x, params["w1"]), params["g1"], params["b1"]), 0.0)
    y = jnp.maximum(bn(lin(y, params["w2"]), params["g2"], params["b2"]), 0.0)
    z = bn(lin(y, params["w3"]), params["g3"], params["b3"])
    c = lin(z, params["wc"].reshape(-1, 1))                    # (N, 1)
    v = jnp.mean(c.reshape(B, H * W), axis=1, keepdims=True)   # (B, 1)
    return jnp.concatenate([1.0 - v, v], axis=-1)


if __name__ == "__main__":
    key = jax.random.PRNGKey(0)
    kx, kp = jax.random.split(key)

    B, C, H, W = 2, 32, 16, 16        # backbone.output_dim = 32 (small synthetic)
    x = jax.random.normal(kx, (B, C, H, W), jnp.float32)
    params = init_params(kp, c_in=C, hidden=64, out_dim=64)

    out = jax.block_until_ready(simsiam_inference_test(x, params))

    ref = _reference(x, params)
    assert out.shape == (B, 2)
    assert jnp.allclose(out, ref, atol=5e-2, rtol=5e-2), (out, ref)

    print("KERNEL_OK")
</pallas_src>

<mosaic_0001>
module attributes {stable_mosaic.version = 11 : i64} {
  func.func @_simsiam_kernel(%arg0: i32, %arg1: i32, %arg2: i32, %arg3: memref<1x256x32xbf16, #tpu.memory_space<vmem>>, %arg4: memref<32x64xbf16, #tpu.memory_space<vmem>>, %arg5: memref<1x64xf32, #tpu.memory_space<vmem>>, %arg6: memref<1x64xf32, #tpu.memory_space<vmem>>, %arg7: memref<64x64xbf16, #tpu.memory_space<vmem>>, %arg8: memref<1x64xf32, #tpu.memory_space<vmem>>, %arg9: memref<1x64xf32, #tpu.memory_space<vmem>>, %arg10: memref<64x64xbf16, #tpu.memory_space<vmem>>, %arg11: memref<1x64xf32, #tpu.memory_space<vmem>>, %arg12: memref<1x64xf32, #tpu.memory_space<vmem>>, %arg13: memref<64x1xbf16, #tpu.memory_space<vmem>>, %arg14: memref<2x2xf32, #tpu.memory_space<vmem>>, %arg15: memref<1x64xf32, #tpu.memory_space<vmem>>, %arg16: memref<1x64xf32, #tpu.memory_space<vmem>>, %arg17: memref<1x64xf32, #tpu.memory_space<vmem>>, %arg18: memref<1x64xf32, #tpu.memory_space<vmem>>, %arg19: memref<1x64xf32, #tpu.memory_space<vmem>>, %arg20: memref<1x64xf32, #tpu.memory_space<vmem>>, %arg21: memref<2x64xf32, #tpu.memory_space<vmem>>) attributes {dimension_semantics = [#tpu.dimension_semantics<arbitrary>, #tpu.dimension_semantics<arbitrary>, #tpu.dimension_semantics<arbitrary>], iteration_bounds = array<i64: 3, 2, 1>, scalar_prefetch = 0 : i64, scratch_operands = 7 : i64, tpu.core_type = #tpu.core_type<tc>, window_params = [{transform_indices = @transform_0, window_bounds = array<i64: 1, 256, 32>}, {pipeline_mode = #tpu.pipeline_mode<synchronous>, transform_indices = @transform_1, window_bounds = array<i64: 32, 64>}, {pipeline_mode = #tpu.pipeline_mode<synchronous>, transform_indices = @transform_2, window_bounds = array<i64: 1, 64>}, {pipeline_mode = #tpu.pipeline_mode<synchronous>, transform_indices = @transform_3, window_bounds = array<i64: 1, 64>}, {pipeline_mode = #tpu.pipeline_mode<synchronous>, transform_indices = @transform_4, window_bounds = array<i64: 64, 64>}, {pipeline_mode = #tpu.pipeline_mode<synchronous>, transform_indices = @transform_5, window_bounds = array<i64: 1, 64>}, {pipeline_mode = #tpu.pipeline_mode<synchronous>, transform_indices = @transform_6, window_bounds = array<i64: 1, 64>}, {pipeline_mode = #tpu.pipeline_mode<synchronous>, transform_indices = @transform_7, window_bounds = array<i64: 64, 64>}, {pipeline_mode = #tpu.pipeline_mode<synchronous>, transform_indices = @transform_8, window_bounds = array<i64: 1, 64>}, {pipeline_mode = #tpu.pipeline_mode<synchronous>, transform_indices = @transform_9, window_bounds = array<i64: 1, 64>}, {pipeline_mode = #tpu.pipeline_mode<synchronous>, transform_indices = @transform_10, window_bounds = array<i64: 64, 1>}, {pipeline_mode = #tpu.pipeline_mode<synchronous>, transform_indices = @transform_11, window_bounds = array<i64: 2, 2>}]} {
    %c0_i32 = arith.constant 0 : i32
    %0 = arith.cmpi eq, %arg1, %c0_i32 : i32
    %c0_i32_0 = arith.constant 0 : i32
    %1 = arith.cmpi eq, %arg2, %c0_i32_0 : i32
    %2 = arith.andi %0, %1 : i1
    %c1_i32 = arith.constant 1 : i32
    %3 = arith.cmpi eq, %arg1, %c1_i32 : i32
    %c0_i32_1 = arith.constant 0 : i32
    %4 = arith.cmpi eq, %arg2, %c0_i32_1 : i32
    %5 = arith.andi %3, %4 : i1
    %c0 = arith.constant 0 : index
    %c0_2 = arith.constant 0 : index
    %c0_3 = arith.constant 0 : index
    %6 = vector.load %arg3[%c0, %c0_2, %c0_3] : memref<1x256x32xbf16, #tpu.memory_space<vmem>>, vector<1x256x32xbf16>
    %7 = vector.shape_cast %6 : vector<1x256x32xbf16> to vector<256x32xbf16>
    %c0_i32_4 = arith.constant 0 : i32
    %8 = arith.cmpi eq, %arg0, %c0_i32_4 : i32
    %9 = arith.extui %8 : i1 to i32
    %c0_i32_5 = arith.constant 0 : i32
    %10 = arith.cmpi ne, %9, %c0_i32_5 : i32
    scf.if %10 {
      %17 = arith.extui %2 : i1 to i32
      %c0_i32_9 = arith.constant 0 : i32
      %18 = arith.cmpi ne, %17, %c0_i32_9 : i32
      scf.if %18 {
        %cst_22 = arith.constant 0.000000e+00 : f32
        %32 = vector.broadcast %cst_22 : f32 to vector<1x64xf32>
        %c0_23 = arith.constant 0 : index
        %c0_24 = arith.constant 0 : index
        %33 = vector.load %arg15[%c0_23, %c0_24] : memref<1x64xf32, #tpu.memory_space<vmem>>, vector<1x64xf32>
        tpu.vector_store %arg15[%c0_23, %c0_24], %32 {strides = array<i32>} : memref<1x64xf32, #tpu.memory_space<vmem>>, vector<1x64xf32>,
        %cst_25 = arith.constant 0.000000e+00 : f32
        %34 = vector.broadcast %cst_25 : f32 to vector<1x64xf32>
        %c0_26 = arith.constant 0 : index
        %c0_27 = arith.constant 0 : index
        %35 = vector.load %arg16[%c0_26, %c0_27] : memref<1x64xf32, #tpu.memory_space<vmem>>, vector<1x64xf32>
        tpu.vector_store %arg16[%c0_26, %c0_27], %34 {strides = array<i32>} : memref<1x64xf32, #tpu.memory_space<vmem>>, vector<1x64xf32>,
      } else {
      }
      %c0_10 = arith.constant 0 : index
      %c0_11 = arith.constant 0 : index
      %19 = vector.load %arg4[%c0_10, %c0_11] : memref<32x64xbf16, #tpu.memory_space<vmem>>, vector<32x64xbf16>
      %cst = arith.constant dense<0.000000e+00> : vector<256x64xf32>
      %20 = tpu.matmul %7, %19, %cst {dimension_numbers = #tpu.dot_dimension_numbers<[1], [0], [0], [1], [0, 0, 1, 1], [], []>} : vector<256x32xbf16>, vector<32x64xbf16>, vector<256x64xf32> -> vector<256x64xf32>
      %c0_12 = arith.constant 0 : index
      %c0_13 = arith.constant 0 : index
      %21 = vector.load %arg15[%c0_12, %c0_13] : memref<1x64xf32, #tpu.memory_space<vmem>>, vector<1x64xf32>
      %cst_14 = arith.constant dense<0.000000e+00> : vector<64xf32>
      %22 = vector.multi_reduction <add>, %20, %cst_14 [0] : vector<256x64xf32> to vector<64xf32>
      %23 = vector.shape_cast %22 : vector<64xf32> to vector<1x64xf32>
      %24 = arith.addf %21, %23 : vector<1x64xf32>
      %c0_15 = arith.constant 0 : index
      %c0_16 = arith.constant 0 : index
      %25 = vector.load %arg15[%c0_15, %c0_16] : memref<1x64xf32, #tpu.memory_space<vmem>>, vector<1x64xf32>
      tpu.vector_store %arg15[%c0_15, %c0_16], %24 {strides = array<i32>} : memref<1x64xf32, #tpu.memory_space<vmem>>, vector<1x64xf32>,
      %c0_17 = arith.constant 0 : index
      %c0_18 = arith.constant 0 : index
      %26 = vector.load %arg16[%c0_17, %c0_18] : memref<1x64xf32, #tpu.memory_space<vmem>>, vector<1x64xf32>
      %27 = arith.mulf %20, %20 : vector<256x64xf32>
      %cst_19 = arith.constant dense<0.000000e+00> : vector<64xf32>
      %28 = vector.multi_reduction <add>, %27, %cst_19 [0] : vector<256x64xf32> to vector<64xf32>
      %29 = vector.shape_cast %28 : vector<64xf32> to vector<1x64xf32>
      %30 = arith.addf %26, %29 : vector<1x64xf32>
      %c0_20 = arith.constant 0 : index
      %c0_21 = arith.constant 0 : index
      %31 = vector.load %arg16[%c0_20, %c0_21] : memref<1x64xf32, #tpu.memory_space<vmem>>, vector<1x64xf32>
      tpu.vector_store %arg16[%c0_20, %c0_21], %30 {strides = array<i32>} : memref<1x64xf32, #tpu.memory_space<vmem>>, vector<1x64xf32>,
    } else {
    }
    %c1_i32_6 = arith.constant 1 : i32
    %11 = arith.cmpi eq, %arg0, %c1_i32_6 : i32
    %12 = arith.extui %11 : i1 to i32
    %c0_i32_7 = arith.constant 0 : i32
    %13 = arith.cmpi ne, %12, %c0_i32_7 : i32
    scf.if %13 {
      %17 = arith.extui %2 : i1 to i32
      %c0_i32_9 = arith.constant 0 : i32
      %18 = arith.cmpi ne, %17, %c0_i32_9 : i32
      scf.if %18 {
        %cst_37 = arith.constant 0.000000e+00 : f32
        %57 = vector.broadcast %cst_37 : f32 to vector<1x64xf32>
        %c0_38 = arith.constant 0 : index
        %c0_39 = arith.constant 0 : index
        %58 = vector.load %arg17[%c0_38, %c0_39] : memref<1x64xf32, #tpu.memory_space<vmem>>, vector<1x64xf32>
        tpu.vector_store %arg17[%c0_38, %c0_39], %57 {strides = array<i32>} : memref<1x64xf32, #tpu.memory_space<vmem>>, vector<1x64xf32>,
        %cst_40 = arith.constant 0.000000e+00 : f32
        %59 = vector.broadcast %cst_40 : f32 to vector<1x64xf32>
        %c0_41 = arith.constant 0 : index
        %c0_42 = arith.constant 0 : index
        %60 = vector.load %arg18[%c0_41, %c0_42] : memref<1x64xf32, #tpu.memory_space<vmem>>, vector<1x64xf32>
        tpu.vector_store %arg18[%c0_41, %c0_42], %59 {strides = array<i32>} : memref<1x64xf32, #tpu.memory_space<vmem>>, vector<1x64xf32>,
      } else {
      }
      %c0_10 = arith.constant 0 : index
      %c0_11 = arith.constant 0 : index
      %19 = vector.load %arg15[%c0_10, %c0_11] : memref<1x64xf32, #tpu.memory_space<vmem>>, vector<1x64xf32>
      %cst = arith.constant 0.001953125 : f32
      %20 = vector.broadcast %cst : f32 to vector<1x64xf32>
      %21 = arith.mulf %19, %20 : vector<1x64xf32>
      %c0_12 = arith.constant 0 : index
      %c0_13 = arith.constant 0 : index
      %22 = vector.load %arg16[%c0_12, %c0_13] : memref<1x64xf32, #tpu.memory_space<vmem>>, vector<1x64xf32>
      %cst_14 = arith.constant 0.001953125 : f32
      %23 = vector.broadcast %cst_14 : f32 to vector<1x64xf32>
      %24 = arith.mulf %22, %23 : vector<1x64xf32>
      %25 = arith.mulf %21, %21 : vector<1x64xf32>
      %26 = arith.subf %24, %25 : vector<1x64xf32>
      %cst_15 = arith.constant 9.99999974E-6 : f32
      %27 = vector.broadcast %cst_15 : f32 to vector<1x64xf32>
      %28 = arith.addf %26, %27 : vector<1x64xf32>
      %29 = math.rsqrt %28 : vector<1x64xf32>
      %c0_16 = arith.constant 0 : index
      %c0_17 = arith.constant 0 : index
      %30 = vector.load %arg5[%c0_16, %c0_17] : memref<1x64xf32, #tpu.memory_space<vmem>>, vector<1x64xf32>
      %31 = arith.mulf %30, %29 : vector<1x64xf32>
      %c0_18 = arith.constant 0 : index
      %c0_19 = arith.constant 0 : index
      %32 = vector.load %arg6[%c0_18, %c0_19] : memref<1x64xf32, #tpu.memory_space<vmem>>, vector<1x64xf32>
      %33 = arith.mulf %21, %31 : vector<1x64xf32>
      %34 = arith.subf %32, %33 : vector<1x64xf32>
      %c0_20 = arith.constant 0 : index
      %c0_21 = arith.constant 0 : index
      %35 = vector.load %arg4[%c0_20, %c0_21] : memref<32x64xbf16, #tpu.memory_space<vmem>>, vector<32x64xbf16>
      %cst_22 = arith.constant dense<0.000000e+00> : vector<256x64xf32>
      %36 = tpu.matmul %7, %35, %cst_22 {dimension_numbers = #tpu.dot_dimension_numbers<[1], [0], [0], [1], [0, 0, 1, 1], [], []>} : vector<256x32xbf16>, vector<32x64xbf16>, vector<256x64xf32> -> vector<256x64xf32>
      %37 = vector.broadcast %31 : vector<1x64xf32> to vector<256x64xf32>
      %38 = arith.mulf %36, %37 : vector<256x64xf32>
      %39 = vector.broadcast %34 : vector<1x64xf32> to vector<256x64xf32>
      %40 = arith.addf %38, %39 : vector<256x64xf32>
      %cst_23 = arith.constant 0.000000e+00 : f32
      %41 = vector.broadcast %cst_23 : f32 to vector<256x64xf32>
      %42 = arith.maximumf %40, %41 : vector<256x64xf32>
      %43 = arith.truncf %42 : vector<256x64xf32> to vector<256x64xbf16>
      %c0_24 = arith.constant 0 : index
      %c0_25 = arith.constant 0 : index
      %44 = vector.load %arg7[%c0_24, %c0_25] : memref<64x64xbf16, #tpu.memory_space<vmem>>, vector<64x64xbf16>
      %cst_26 = arith.constant dense<0.000000e+00> : vector<256x64xf32>
      %45 = tpu.matmul %43, %44, %cst_26 {dimension_numbers = #tpu.dot_dimension_numbers<[1], [0], [0], [1], [0, 0, 1, 1], [], []>} : vector<256x64xbf16>, vector<64x64xbf16>, vector<256x64xf32> -> vector<256x64xf32>
      %c0_27 = arith.constant 0 : index
      %c0_28 = arith.constant 0 : index
      %46 = vector.load %arg17[%c0_27, %c0_28] : memref<1x64xf32, #tpu.memory_space<vmem>>, vector<1x64xf32>
      %cst_29 = arith.constant dense<0.000000e+00> : vector<64xf32>
      %47 = vector.multi_reduction <add>, %45, %cst_29 [0] : vector<256x64xf32> to vector<64xf32>
      %48 = vector.shape_cast %47 : vector<64xf32> to vector<1x64xf32>
      %49 = arith.addf %46, %48 : vector<1x64xf32>
      %c0_30 = arith.constant 0 : index
      %c0_31 = arith.constant 0 : index
      %50 = vector.load %arg17[%c0_30, %c0_31] : memref<1x64xf32, #tpu.memory_space<vmem>>, vector<1x64xf32>
      tpu.vector_store %arg17[%c0_30, %c0_31], %49 {strides = array<i32>} : memref<1x64xf32, #tpu.memory_space<vmem>>, vector<1x64xf32>,
      %c0_32 = arith.constant 0 : index
      %c0_33 = arith.constant 0 : index
      %51 = vector.load %arg18[%c0_32, %c0_33] : memref<1x64xf32, #tpu.memory_space<vmem>>, vector<1x64xf32>
      %52 = arith.mulf %45, %45 : vector<256x64xf32>
      %cst_34 = arith.constant dense<0.000000e+00> : vector<64xf32>
      %53 = vector.multi_reduction <add>, %52, %cst_34 [0] : vector<256x64xf32> to vector<64xf32>
      %54 = vector.shape_cast %53 : vector<64xf32> to vector<1x64xf32>
      %55 = arith.addf %51, %54 : vector<1x64xf32>
      %c0_35 = arith.constant 0 : index
      %c0_36 = arith.constant 0 : index
      %56 = vector.load %arg18[%c0_35, %c0_36] : memref<1x64xf32, #tpu.memory_space<vmem>>, vector<1x64xf32>
      tpu.vector_store %arg18[%c0_35, %c0_36], %55 {strides = array<i32>} : memref<1x64xf32, #tpu.memory_space<vmem>>, vector<1x64xf32>,
    } else {
    }
    %c2_i32 = arith.constant 2 : i32
    %14 = arith.cmpi eq, %arg0, %c2_i32 : i32
    %15 = arith.extui %14 : i1 to i32
    %c0_i32_8 = arith.constant 0 : i32
    %16 = arith.cmpi ne, %15, %c0_i32_8 : i32
    scf.if %16 {
      %17 = arith.extui %2 : i1 to i32
      %c0_i32_9 = arith.constant 0 : i32
      %18 = arith.cmpi ne, %17, %c0_i32_9 : i32
      scf.if %18 {
        %cst_57 = arith.constant 0.000000e+00 : f32
        %95 = vector.broadcast %cst_57 : f32 to vector<1x64xf32>
        %c0_58 = arith.constant 0 : index
        %c0_59 = arith.constant 0 : index
        %96 = vector.load %arg19[%c0_58, %c0_59] : memref<1x64xf32, #tpu.memory_space<vmem>>, vector<1x64xf32>
        tpu.vector_store %arg19[%c0_58, %c0_59], %95 {strides = array<i32>} : memref<1x64xf32, #tpu.memory_space<vmem>>, vector<1x64xf32>,
        %cst_60 = arith.constant 0.000000e+00 : f32
        %97 = vector.broadcast %cst_60 : f32 to vector<1x64xf32>
        %c0_61 = arith.constant 0 : index
        %c0_62 = arith.constant 0 : index
        %98 = vector.load %arg20[%c0_61, %c0_62] : memref<1x64xf32, #tpu.memory_space<vmem>>, vector<1x64xf32>
        tpu.vector_store %arg20[%c0_61, %c0_62], %97 {strides = array<i32>} : memref<1x64xf32, #tpu.memory_space<vmem>>, vector<1x64xf32>,
        %cst_63 = arith.constant 0.000000e+00 : f32
        %99 = vector.broadcast %cst_63 : f32 to vector<2x64xf32>
        %c0_64 = arith.constant 0 : index
        %c0_65 = arith.constant 0 : index
        %100 = vector.load %arg21[%c0_64, %c0_65] : memref<2x64xf32, #tpu.memory_space<vmem>>, vector<2x64xf32>
        tpu.vector_store %arg21[%c0_64, %c0_65], %99 {strides = array<i32>} : memref<2x64xf32, #tpu.memory_space<vmem>>, vector<2x64xf32>,
      } else {
      }
      %c0_10 = arith.constant 0 : index
      %c0_11 = arith.constant 0 : index
      %19 = vector.load %arg15[%c0_10, %c0_11] : memref<1x64xf32, #tpu.memory_space<vmem>>, vector<1x64xf32>
      %cst = arith.constant 0.001953125 : f32
      %20 = vector.broadcast %cst : f32 to vector<1x64xf32>
      %21 = arith.mulf %19, %20 : vector<1x64xf32>
      %c0_12 = arith.constant 0 : index
      %c0_13 = arith.constant 0 : index
      %22 = vector.load %arg16[%c0_12, %c0_13] : memref<1x64xf32, #tpu.memory_space<vmem>>, vector<1x64xf32>
      %cst_14 = arith.constant 0.001953125 : f32
      %23 = vector.broadcast %cst_14 : f32 to vector<1x64xf32>
      %24 = arith.mulf %22, %23 : vector<1x64xf32>
      %25 = arith.mulf %21, %21 : vector<1x64xf32>
      %26 = arith.subf %24, %25 : vector<1x64xf32>
      %cst_15 = arith.constant 9.99999974E-6 : f32
      %27 = vector.broadcast %cst_15 : f32 to vector<1x64xf32>
      %28 = arith.addf %26, %27 : vector<1x64xf32>
      %29 = math.rsqrt %28 : vector<1x64xf32>
      %c0_16 = arith.constant 0 : index
      %c0_17 = arith.constant 0 : index
      %30 = vector.load %arg5[%c0_16, %c0_17] : memref<1x64xf32, #tpu.memory_space<vmem>>, vector<1x64xf32>
      %31 = arith.mulf %30, %29 : vector<1x64xf32>
      %c0_18 = arith.constant 0 : index
      %c0_19 = arith.constant 0 : index
      %32 = vector.load %arg6[%c0_18, %c0_19] : memref<1x64xf32, #tpu.memory_space<vmem>>, vector<1x64xf32>
      %33 = arith.mulf %21, %31 : vector<1x64xf32>
      %34 = arith.subf %32, %33 : vector<1x64xf32>
      %c0_20 = arith.constant 0 : index
      %c0_21 = arith.constant 0 : index
      %35 = vector.load %arg17[%c0_20, %c0_21] : memref<1x64xf32, #tpu.memory_space<vmem>>, vector<1x64xf32>
      %cst_22 = arith.constant 0.001953125 : f32
      %36 = vector.broadcast %cst_22 : f32 to vector<1x64xf32>
      %37 = arith.mulf %35, %36 : vector<1x64xf32>
      %c0_23 = arith.constant 0 : index
      %c0_24 = arith.constant 0 : index
      %38 = vector.load %arg18[%c0_23, %c0_24] : memref<1x64xf32, #tpu.memory_space<vmem>>, vector<1x64xf32>
      %cst_25 = arith.constant 0.001953125 : f32
      %39 = vector.broadcast %cst_25 : f32 to vector<1x64xf32>
      %40 = arith.mulf %38, %39 : vector<1x64xf32>
      %41 = arith.mulf %37, %37 : vector<1x64xf32>
      %42 = arith.subf %40, %41 : vector<1x64xf32>
      %cst_26 = arith.constant 9.99999974E-6 : f32
      %43 = vector.broadcast %cst_26 : f32 to vector<1x64xf32>
      %44 = arith.addf %42, %43 : vector<1x64xf32>
      %45 = math.rsqrt %44 : vector<1x64xf32>
      %c0_27 = arith.constant 0 : index
      %c0_28 = arith.constant 0 : index
      %46 = vector.load %arg8[%c0_27, %c0_28] : memref<1x64xf32, #tpu.memory_space<vmem>>, vector<1x64xf32>
      %47 = arith.mulf %46, %45 : vector<1x64xf32>
      %c0_29 = arith.constant 0 : index
      %c0_30 = arith.constant 0 : index
      %48 = vector.load %arg9[%c0_29, %c0_30] : memref<1x64xf32, #tpu.memory_space<vmem>>, vector<1x64xf32>
      %49 = arith.mulf %37, %47 : vector<1x64xf32>
      %50 = arith.subf %48, %49 : vector<1x64xf32>
      %c0_31 = arith.constant 0 : index
      %c0_32 = arith.constant 0 : index
      %51 = vector.load %arg4[%c0_31, %c0_32] : memref<32x64xbf16, #tpu.memory_space<vmem>>, vector<32x64xbf16>
      %cst_33 = arith.constant dense<0.000000e+00> : vector<256x64xf32>
      %52 = tpu.matmul %7, %51, %cst_33 {dimension_numbers = #tpu.dot_dimension_numbers<[1], [0], [0], [1], [0, 0, 1, 1], [], []>} : vector<256x32xbf16>, vector<32x64xbf16>, vector<256x64xf32> -> vector<256x64xf32>
      %53 = vector.broadcast %31 : vector<1x64xf32> to vector<256x64xf32>
      %54 = arith.mulf %52, %53 : vector<256x64xf32>
      %55 = vector.broadcast %34 : vector<1x64xf32> to vector<256x64xf32>
      %56 = arith.addf %54, %55 : vector<256x64xf32>
      %cst_34 = arith.constant 0.000000e+00 : f32
      %57 = vector.broadcast %cst_34 : f32 to vector<256x64xf32>
      %58 = arith.maximumf %56, %57 : vector<256x64xf32>
      %59 = arith.truncf %58 : vector<256x64xf32> to vector<256x64xbf16>
      %c0_35 = arith.constant 0 : index
      %c0_36 = arith.constant 0 : index
      %60 = vector.load %arg7[%c0_35, %c0_36] : memref<64x64xbf16, #tpu.memory_space<vmem>>, vector<64x64xbf16>
      %cst_37 = arith.constant dense<0.000000e+00> : vector<256x64xf32>
      %61 = tpu.matmul %59, %60, %cst_37 {dimension_numbers = #tpu.dot_dimension_numbers<[1], [0], [0], [1], [0, 0, 1, 1], [], []>} : vector<256x64xbf16>, vector<64x64xbf16>, vector<256x64xf32> -> vector<256x64xf32>
      %62 = vector.broadcast %47 : vector<1x64xf32> to vector<256x64xf32>
      %63 = arith.mulf %61, %62 : vector<256x64xf32>
      %64 = vector.broadcast %50 : vector<1x64xf32> to vector<256x64xf32>
      %65 = arith.addf %63, %64 : vector<256x64xf32>
      %cst_38 = arith.constant 0.000000e+00 : f32
      %66 = vector.broadcast %cst_38 : f32 to vector<256x64xf32>
      %67 = arith.maximumf %65, %66 : vector<256x64xf32>
      %68 = arith.truncf %67 : vector<256x64xf32> to vector<256x64xbf16>
      %c0_39 = arith.constant 0 : index
      %c0_40 = arith.constant 0 : index
      %69 = vector.load %arg10[%c0_39, %c0_40] : memref<64x64xbf16, #tpu.memory_space<vmem>>, vector<64x64xbf16>
      %cst_41 = arith.constant dense<0.000000e+00> : vector<256x64xf32>
      %70 = tpu.matmul %68, %69, %cst_41 {dimension_numbers = #tpu.dot_dimension_numbers<[1], [0], [0], [1], [0, 0, 1, 1], [], []>} : vector<256x64xbf16>, vector<64x64xbf16>, vector<256x64xf32> -> vector<256x64xf32>
      %cst_42 = arith.constant dense<0.000000e+00> : vector<64xf32>
      %71 = vector.multi_reduction <add>, %70, %cst_42 [0] : vector<256x64xf32> to vector<64xf32>
      %72 = vector.shape_cast %71 : vector<64xf32> to vector<1x64xf32>
      %c0_43 = arith.constant 0 : index
      %c0_44 = arith.constant 0 : index
      %73 = vector.load %arg19[%c0_43, %c0_44] : memref<1x64xf32, #tpu.memory_space<vmem>>, vector<1x64xf32>
      %74 = arith.addf %73, %72 : vector<1x64xf32>
      %c0_45 = arith.constant 0 : index
      %c0_46 = arith.constant 0 : index
      %75 = vector.load %arg19[%c0_45, %c0_46] : memref<1x64xf32, #tpu.memory_space<vmem>>, vector<1x64xf32>
      tpu.vector_store %arg19[%c0_45, %c0_46], %74 {strides = array<i32>} : memref<1x64xf32, #tpu.memory_space<vmem>>, vector<1x64xf32>,
      %c0_47 = arith.constant 0 : index
      %c0_48 = arith.constant 0 : index
      %76 = vector.load %arg20[%c0_47, %c0_48] : memref<1x64xf32, #tpu.memory_space<vmem>>, vector<1x64xf32>
      %77 = arith.mulf %70, %70 : vector<256x64xf32>
      %cst_49 = arith.constant dense<0.000000e+00> : vector<64xf32>
      %78 = vector.multi_reduction <add>, %77, %cst_49 [0] : vector<256x64xf32> to vector<64xf32>
      %79 = vector.shape_cast %78 : vector<64xf32> to vector<1x64xf32>
      %80 = arith.addf %76, %79 : vector<1x64xf32>
      %c0_50 = arith.constant 0 : index
      %c0_51 = arith.constant 0 : index
      %81 = vector.load %arg20[%c0_50, %c0_51] : memref<1x64xf32, #tpu.memory_space<vmem>>, vector<1x64xf32>
      tpu.vector_store %arg20[%c0_50, %c0_51], %80 {strides = array<i32>} : memref<1x64xf32, #tpu.memory_space<vmem>>, vector<1x64xf32>,
      %82 = tpu.iota {dimensions = array<i32: 0>} : vector<2x1xi32>
      %83 = vector.broadcast %arg1 : i32 to vector<2x1xi32>
      %84 = arith.cmpi eq, %82, %83 : vector<2x1xi32>
      %85 = arith.extui %84 : vector<2x1xi1> to vector<2x1xi32>
      %86 = arith.sitofp %85 : vector<2x1xi32> to vector<2x1xf32>
      %c0_52 = arith.constant 0 : index
      %c0_53 = arith.constant 0 : index
      %87 = vector.load %arg21[%c0_52, %c0_53] : memref<2x64xf32, #tpu.memory_space<vmem>>, vector<2x64xf32>
      %88 = vector.broadcast %86 : vector<2x1xf32> to vector<2x64xf32>
      %89 = vector.broadcast %72 : vector<1x64xf32> to vector<2x64xf32>
      %90 = arith.mulf %88, %89 : vector<2x64xf32>
      %91 = arith.addf %87, %90 : vector<2x64xf32>
      %c0_54 = arith.constant 0 : index
      %c0_55 = arith.constant 0 : index
      %92 = vector.load %arg21[%c0_54, %c0_55] : memref<2x64xf32, #tpu.memory_space<vmem>>, vector<2x64xf32>
      tpu.vector_store %arg21[%c0_54, %c0_55], %91 {strides = array<i32>} : memref<2x64xf32, #tpu.memory_space<vmem>>, vector<2x64xf32>,
      %93 = arith.extui %5 : i1 to i32
      %c0_i32_56 = arith.constant 0 : i32
      %94 = arith.cmpi ne, %93, %c0_i32_56 : i32
      scf.if %94 {
        %c0_57 = arith.constant 0 : index
        %c0_58 = arith.constant 0 : index
        %95 = vector.load %arg19[%c0_57, %c0_58] : memref<1x64xf32, #tpu.memory_space<vmem>>, vector<1x64xf32>
        %cst_59 = arith.constant 0.001953125 : f32
        %96 = vector.broadcast %cst_59 : f32 to vector<1x64xf32>
        %97 = arith.mulf %95, %96 : vector<1x64xf32>
        %c0_60 = arith.constant 0 : index
        %c0_61 = arith.constant 0 : index
        %98 = vector.load %arg20[%c0_60, %c0_61] : memref<1x64xf32, #tpu.memory_space<vmem>>, vector<1x64xf32>
        %cst_62 = arith.constant 0.001953125 : f32
        %99 = vector.broadcast %cst_62 : f32 to vector<1x64xf32>
        %100 = arith.mulf %98, %99 : vector<1x64xf32>
        %101 = arith.mulf %97, %97 : vector<1x64xf32>
        %102 = arith.subf %100, %101 : vector<1x64xf32>
        %cst_63 = arith.constant 9.99999974E-6 : f32
        %103 = vector.broadcast %cst_63 : f32 to vector<1x64xf32>
        %104 = arith.addf %102, %103 : vector<1x64xf32>
        %105 = math.rsqrt %104 : vector<1x64xf32>
        %c0_64 = arith.constant 0 : index
        %c0_65 = arith.constant 0 : index
        %106 = vector.load %arg11[%c0_64, %c0_65] : memref<1x64xf32, #tpu.memory_space<vmem>>, vector<1x64xf32>
        %107 = arith.mulf %106, %105 : vector<1x64xf32>
        %c0_66 = arith.constant 0 : index
        %c0_67 = arith.constant 0 : index
        %108 = vector.load %arg12[%c0_66, %c0_67] : memref<1x64xf32, #tpu.memory_space<vmem>>, vector<1x64xf32>
        %109 = arith.mulf %97, %107 : vector<1x64xf32>
        %110 = arith.subf %108, %109 : vector<1x64xf32>
        %c0_68 = arith.constant 0 : index
        %c0_69 = arith.constant 0 : index
        %111 = vector.load %arg21[%c0_68, %c0_69] : memref<2x64xf32, #tpu.memory_space<vmem>>, vector<2x64xf32>
        %cst_70 = arith.constant 3.906250e-03 : f32
        %112 = vector.broadcast %cst_70 : f32 to vector<2x64xf32>
        %113 = arith.mulf %111, %112 : vector<2x64xf32>
        %114 = vector.broadcast %107 : vector<1x64xf32> to vector<2x64xf32>
        %115 = arith.mulf %113, %114 : vector<2x64xf32>
        %116 = vector.broadcast %110 : vector<1x64xf32> to vector<2x64xf32>
        %117 = arith.addf %115, %116 : vector<2x64xf32>
        %118 = arith.truncf %117 : vector<2x64xf32> to vector<2x64xbf16>
        %c0_71 = arith.constant 0 : index
        %c0_72 = arith.constant 0 : index
        %119 = vector.load %arg13[%c0_71, %c0_72] : memref<64x1xbf16, #tpu.memory_space<vmem>>, vector<64x1xbf16>
        %cst_73 = arith.constant dense<0.000000e+00> : vector<2x1xf32>
        %120 = tpu.matmul %118, %119, %cst_73 {dimension_numbers = #tpu.dot_dimension_numbers<[1], [0], [0], [1], [0, 0, 1, 1], [], []>} : vector<2x64xbf16>, vector<64x1xbf16>, vector<2x1xf32> -> vector<2x1xf32>
        %cst_74 = arith.constant 1.000000e+00 : f32
        %121 = vector.broadcast %cst_74 : f32 to vector<2x1xf32>
        %122 = arith.subf %121, %120 : vector<2x1xf32>
        %123 = tpu.concatenate %122, %120 in 1 : vector<2x1xf32>, vector<2x1xf32> -> vector<2x2xf32>
        %c0_75 = arith.constant 0 : index
        %c0_76 = arith.constant 0 : index
        %124 = vector.load %arg14[%c0_75, %c0_76] : memref<2x2xf32, #tpu.memory_space<vmem>>, vector<2x2xf32>
        tpu.vector_store %arg14[%c0_75, %c0_76], %123 {strides = array<i32>} : memref<2x2xf32, #tpu.memory_space<vmem>>, vector<2x2xf32>,
      } else {
      }
    } else {
    }
    return
  }
  func.func @transform_0(%arg0: i32, %arg1: i32, %arg2: i32) -> (i32, i32, i32) {
    %c0_i32 = arith.constant 0 : i32
    %c0_i32_0 = arith.constant 0 : i32
    return %arg1, %arg2, %c0_i32 : i32, i32, i32
  }
  func.func @transform_1(%arg0: i32, %arg1: i32, %arg2: i32) -> (i32, i32) {
    %c0_i32 = arith.constant 0 : i32
    %c0_i32_0 = arith.constant 0 : i32
    %c0_i32_1 = arith.constant 0 : i32
    return %c0_i32, %c0_i32_0 : i32, i32
  }
  func.func @transform_2(%arg0: i32, %arg1: i32, %arg2: i32) -> (i32, i32) {
    %c0_i32 = arith.constant 0 : i32
    %c0_i32_0 = arith.constant 0 : i32
    %c0_i32_1 = arith.constant 0 : i32
    return %c0_i32, %c0_i32_0 : i32, i32
  }
  func.func @transform_3(%arg0: i32, %arg1: i32, %arg2: i32) -> (i32, i32) {
    %c0_i32 = arith.constant 0 : i32
    %c0_i32_0 = arith.constant 0 : i32
    %c0_i32_1 = arith.constant 0 : i32
    return %c0_i32, %c0_i32_0 : i32, i32
  }
  func.func @transform_4(%arg0: i32, %arg1: i32, %arg2: i32) -> (i32, i32) {
    %c0_i32 = arith.constant 0 : i32
    %c0_i32_0 = arith.constant 0 : i32
    %c0_i32_1 = arith.constant 0 : i32
    return %c0_i32, %c0_i32_0 : i32, i32
  }
  func.func @transform_5(%arg0: i32, %arg1: i32, %arg2: i32) -> (i32, i32) {
    %c0_i32 = arith.constant 0 : i32
    %c0_i32_0 = arith.constant 0 : i32
    %c0_i32_1 = arith.constant 0 : i32
    return %c0_i32, %c0_i32_0 : i32, i32
  }
  func.func @transform_6(%arg0: i32, %arg1: i32, %arg2: i32) -> (i32, i32) {
    %c0_i32 = arith.constant 0 : i32
    %c0_i32_0 = arith.constant 0 : i32
    %c0_i32_1 = arith.constant 0 : i32
    return %c0_i32, %c0_i32_0 : i32, i32
  }
  func.func @transform_7(%arg0: i32, %arg1: i32, %arg2: i32) -> (i32, i32) {
    %c0_i32 = arith.constant 0 : i32
    %c0_i32_0 = arith.constant 0 : i32
    %c0_i32_1 = arith.constant 0 : i32
    return %c0_i32, %c0_i32_0 : i32, i32
  }
  func.func @transform_8(%arg0: i32, %arg1: i32, %arg2: i32) -> (i32, i32) {
    %c0_i32 = arith.constant 0 : i32
    %c0_i32_0 = arith.constant 0 : i32
    %c0_i32_1 = arith.constant 0 : i32
    return %c0_i32, %c0_i32_0 : i32, i32
  }
  func.func @transform_9(%arg0: i32, %arg1: i32, %arg2: i32) -> (i32, i32) {
    %c0_i32 = arith.constant 0 : i32
    %c0_i32_0 = arith.constant 0 : i32
    %c0_i32_1 = arith.constant 0 : i32
    return %c0_i32, %c0_i32_0 : i32, i32
  }
  func.func @transform_10(%arg0: i32, %arg1: i32, %arg2: i32) -> (i32, i32) {
    %c0_i32 = arith.constant 0 : i32
    %c0_i32_0 = arith.constant 0 : i32
    %c0_i32_1 = arith.constant 0 : i32
    return %c0_i32, %c0_i32_0 : i32, i32
  }
  func.func @transform_11(%arg0: i32, %arg1: i32, %arg2: i32) -> (i32, i32) {
    %c0_i32 = arith.constant 0 : i32
    %c0_i32_0 = arith.constant 0 : i32
    %c0_i32_1 = arith.constant 0 : i32
    return %c0_i32, %c0_i32_0 : i32, i32
  }
}

</mosaic_0001>

<llo_original>
// kernel: tpu_custom_call.1
$region0: #{tpu_custom_call.1}
  #allocation0 [shape = 'u32[]', space=smem, size = 0x4, offset = 0x4, fixed_abs, tag = 'smem constant byte address 0x4 - core index']
  #allocation1 [shape = 'u32[72,128]{1,0:T(1,128)}', space=vmem, size = 0x9000, scoped, tag = 'internal scratch']
  #allocation2 [shape = 'f32[1,64]{1,0:T(1,128)}', space=vmem, size = 0x200, scoped, tag = 'scratch operand']
  #allocation3 [shape = 'f32[1,64]{1,0:T(1,128)}', space=vmem, size = 0x200, scoped, tag = 'scratch operand']
  #allocation4 [shape = 'f32[1,64]{1,0:T(1,128)}', space=vmem, size = 0x200, scoped, tag = 'scratch operand']
  #allocation5 [shape = 'f32[1,64]{1,0:T(1,128)}', space=vmem, size = 0x200, scoped, tag = 'scratch operand']
  #allocation6 [shape = 'f32[1,64]{1,0:T(1,128)}', space=vmem, size = 0x200, scoped, tag = 'scratch operand']
  #allocation7 [shape = 'f32[1,64]{1,0:T(1,128)}', space=vmem, size = 0x200, scoped, tag = 'scratch operand']
  #allocation8 [shape = 'f32[2,64]{1,0:T(2,128)}', space=vmem, size = 0x400, scoped, tag = 'scratch operand']
  %s0 = inlined_call_operand.vmem [shape: bf16[2,256,32], index: 0, kind: input, shape index: {}]
  %s1 = inlined_call_operand.vmem [shape: bf16[32,64], index: 1, kind: input, shape index: {}]
  %s2 = inlined_call_operand.vmem [shape: f32[1,64], index: 2, kind: input, shape index: {}]
  %s3 = inlined_call_operand.vmem [shape: f32[1,64], index: 3, kind: input, shape index: {}]
  %s4 = inlined_call_operand.vmem [shape: bf16[64,64], index: 4, kind: input, shape index: {}]
  %s5 = inlined_call_operand.vmem [shape: f32[1,64], index: 5, kind: input, shape index: {}]
  %s6 = inlined_call_operand.vmem [shape: f32[1,64], index: 6, kind: input, shape index: {}]
  %s7 = inlined_call_operand.vmem [shape: bf16[64,64], index: 7, kind: input, shape index: {}]
  %s8 = inlined_call_operand.vmem [shape: f32[1,64], index: 8, kind: input, shape index: {}]
  %s9 = inlined_call_operand.vmem [shape: f32[1,64], index: 9, kind: input, shape index: {}]
  %s10 = inlined_call_operand.vmem [shape: bf16[64,1], index: 10, kind: input, shape index: {}]
  %s11 = inlined_call_operand.hbm [shape: f32[2,2], index: 11, kind: output, shape index: {}]
  %s12 = sld [smem:[#allocation0]]
  $region105: #{tpu_custom_call.1} parent=0
    _
  %s14 = ssub.s32 1, %s12
  %s15 = scalar_select 0, %s14, %s12
  $region1: #{tpu_custom_call.1} parent=0
    #allocation9 [shape = 'u8[1024]{0}', space=vmem, size = 0x400, scoped, tag = 'output window, operand 0, single buffered']
    #allocation10 [shape = 's32[2]{0}', space=sflag, size = 0x8, scoped, tag = 'scoped memory for tpu_custom_call.1']
    %16 = vsyncpa [#allocation10], 0
    loop: start=0, step=1, limit=8
    $region2: #{tpu_custom_call.1} parent=1 // loop_pre_header
      _
    $region3: #{tpu_custom_call.1} parent=1 // loop_header
      %s18 = sphi 0, %s22
      %p19 = scmp.ge.s32.totalorder %s18, 8
      %s25 = sphi 0, %s44
      %s26 = sphi 0, %s40
      %s27 = sphi 0, %s36
      %s28 = sphi 0, %s25
      %s29 = sphi 0, %s26
      %s30 = sphi 0, %s27
      %s31 = sphi 0, %s28
      %s32 = sphi 0, %s29
      %s33 = sphi 0, %s30
      %s49 = sphi 0, %s51
      %s52 = sphi 0, %s49
      %s53 = sphi 0, %s52
      %s69 = sphi 0, %s53
      %s73 = sphi 0, %s73
      %s75 = sphi 0, %s73
      %s76 = sphi 0, %s75
      %s90 = sphi 0, %s76
      %s94 = sphi 0, %s94
      %s96 = sphi 0, %s94
      %s97 = sphi 0, %s96
      %s111 = sphi 0, %s97
      %s115 = sphi 0, %s115
      %s117 = sphi 0, %s115
      %s118 = sphi 0, %s117
      %s132 = sphi 0, %s118
      %s136 = sphi 0, %s136
      %s138 = sphi 0, %s136
      %s139 = sphi 0, %s138
      %s153 = sphi 0, %s139
      %s157 = sphi 0, %s157
      %s159 = sphi 0, %s157
      %s160 = sphi 0, %s159
      %s174 = sphi 0, %s160
      %s178 = sphi 0, %s178
      %s180 = sphi 0, %s178
      %s181 = sphi 0, %s180
      %s195 = sphi 0, %s181
      %s199 = sphi 0, %s199
      %s201 = sphi 0, %s199
      %s202 = sphi 0, %s201
      %s216 = sphi 0, %s202
      %s220 = sphi 0, %s220
      %s222 = sphi 0, %s220
      %s223 = sphi 0, %s222
      %s237 = sphi 0, %s223
      %s241 = sphi 0, %s241
      %s243 = sphi 0, %s241
      %s244 = sphi 0, %s243
      %s258 = sphi 0, %s244
      %s262 = sphi 0, %s262
      %s264 = sphi 0, %s262
      %s265 = sphi 0, %s264
      %s279 = sphi 0, %s265
      %s283 = sphi 0, %s283
      %s285 = sphi 0, %s283
      %s286 = sphi 0, %s285
      %s300 = sphi 0, %s286
    $region4: #{tpu_custom_call.1} parent=1 // loop_header_branch
      %21 = sbr.rel (%p19) target = $region8
    $region5: #{tpu_custom_call.1} parent=1 // loop_body
      %s23 = ssub.s32 %s18, 1
      %s24 = ssub.s32 %s18, 2
      %s34 = sadd.s32 1, %s27
      %p35 = scmp.ge.s32.totalorder %s34, 1
      %s36 = scalar_select %p35, 0, %s34
      %s37 = sadd.s32 1, %s26
      %s38 = scalar_select %p35, %s37, %s26
      %p39 = scmp.ge.s32.totalorder %s38, 2
      %s40 = scalar_select %p39, 0, %s38
      %s41 = sadd.s32 1, %s25
      %s42 = scalar_select %p39, %s41, %s25
      %p43 = scmp.ge.s32.totalorder %s42, 3
      %s44 = scalar_select %p43, 0, %s42
      %s45 = ssub.s32 %s26, %s40
      %s46 = ssub.s32 %s27, %s36
      %s47 = sor.u32 %s45, %s46
      %p48 = scmp.eq.s32.totalorder %s47, 0
      %s50 = sadd.s32 %s49, 1
      %s51 = scalar_select %p48, %s49, %s50
      %p54 = pneg %p48
      %p55 = scmp.eq.s32.totalorder %s18, 5
      %p56 = por %p54, %p55
      %p57 = scmp.ne.s32.totalorder %s49, %s52
      %p58 = scmp.eq.s32.totalorder %s18, 0
      %p59 = por %p57, %p58
      %p60 = scmp.ne.s32.totalorder %s49, %s52
      %p61 = scmp.eq.s32.totalorder %s23, 5
      %p62 = por %p60, %p61
      %p63 = scmp.ne.s32.totalorder %s52, %s53
      %p64 = scmp.eq.s32.totalorder %s23, 0
      %p65 = por %p63, %p64
      %p66 = scmp.ne.s32.totalorder %s52, %s53
      %p67 = scmp.eq.s32.totalorder %s24, 5
      %p68 = por %p66, %p67
      %p70 = scmp.ne.s32.totalorder %s53, %s69
      %p71 = scmp.eq.s32.totalorder %s24, 0
      %p72 = por %p70, %p71
      %s74 = sadd.s32 %s73, 1
      %p77 = scmp.eq.s32.totalorder %s18, 5
      %p78 = scmp.ne.s32.totalorder %s73, %s75
      %p79 = scmp.eq.s32.totalorder %s18, 0
      %p80 = por %p78, %p79
      %p81 = scmp.ne.s32.totalorder %s73, %s75
      %p82 = scmp.eq.s32.totalorder %s23, 5
      %p83 = por %p81, %p82
      %p84 = scmp.ne.s32.totalorder %s75, %s76
      %p85 = scmp.eq.s32.totalorder %s23, 0
      %p86 = por %p84, %p85
      %p87 = scmp.ne.s32.totalorder %s75, %s76
      %p88 = scmp.eq.s32.totalorder %s24, 5
      %p89 = por %p87, %p88
      %p91 = scmp.ne.s32.totalorder %s76, %s90
      %p92 = scmp.eq.s32.totalorder %s24, 0
      %p93 = por %p91, %p92
      %s95 = sadd.s32 %s94, 1
      %p98 = scmp.eq.s32.totalorder %s18, 5
      %p99 = scmp.ne.s32.totalorder %s94, %s96
      %p100 = scmp.eq.s32.totalorder %s18, 0
      %p101 = por %p99, %p100
      %p102 = scmp.ne.s32.totalorder %s94, %s96
      %p103 = scmp.eq.s32.totalorder %s23, 5
      %p104 = por %p102, %p103
      %p105 = scmp.ne.s32.totalorder %s96, %s97
      %p106 = scmp.eq.s32.totalorder %s23, 0
      %p107 = por %p105, %p106
      %p108 = scmp.ne.s32.totalorder %s96, %s97
      %p109 = scmp.eq.s32.totalorder %s24, 5
      %p110 = por %p108, %p109
      %p112 = scmp.ne.s32.totalorder %s97, %s111
      %p113 = scmp.eq.s32.totalorder %s24, 0
      %p114 = por %p112, %p113
      %s116 = sadd.s32 %s115, 1
      %p119 = scmp.eq.s32.totalorder %s18, 5
      %p120 = scmp.ne.s32.totalorder %s115, %s117
      %p121 = scmp.eq.s32.totalorder %s18, 0
      %p122 = por %p120, %p121
      %p123 = scmp.ne.s32.totalorder %s115, %s117
      %p124 = scmp.eq.s32.totalorder %s23, 5
      %p125 = por %p123, %p124
      %p126 = scmp.ne.s32.totalorder %s117, %s118
      %p127 = scmp.eq.s32.totalorder %s23, 0
      %p128 = por %p126, %p127
      %p129 = scmp.ne.s32.totalorder %s117, %s118
      %p130 = scmp.eq.s32.totalorder %s24, 5
      %p131 = por %p129, %p130
      %p133 = scmp.ne.s32.totalorder %s118, %s132
      %p134 = scmp.eq.s32.totalorder %s24, 0
      %p135 = por %p133, %p134
      %s137 = sadd.s32 %s136, 1
      %p140 = scmp.eq.s32.totalorder %s18, 5
      %p141 = scmp.ne.s32.totalorder %s136, %s138
      %p142 = scmp.eq.s32.totalorder %s18, 0
      %p143 = por %p141, %p142
      %p144 = scmp.ne.s32.totalorder %s136, %s138
      %p145 = scmp.eq.s32.totalorder %s23, 5
      %p146 = por %p144, %p145
      %p147 = scmp.ne.s32.totalorder %s138, %s139
      %p148 = scmp.eq.s32.totalorder %s23, 0
      %p149 = por %p147, %p148
      %p150 = scmp.ne.s32.totalorder %s138, %s139
      %p151 = scmp.eq.s32.totalorder %s24, 5
      %p152 = por %p150, %p151
      %p154 = scmp.ne.s32.totalorder %s139, %s153
      %p155 = scmp.eq.s32.totalorder %s24, 0
      %p156 = por %p154, %p155
      %s158 = sadd.s32 %s157, 1
      %p161 = scmp.eq.s32.totalorder %s18, 5
      %p162 = scmp.ne.s32.totalorder %s157, %s159
      %p163 = scmp.eq.s32.totalorder %s18, 0
      %p164 = por %p162, %p163
      %p165 = scmp.ne.s32.totalorder %s157, %s159
      %p166 = scmp.eq.s32.totalorder %s23, 5
      %p167 = por %p165, %p166
      %p168 = scmp.ne.s32.totalorder %s159, %s160
      %p169 = scmp.eq.s32.totalorder %s23, 0
      %p170 = por %p168, %p169
      %p171 = scmp.ne.s32.totalorder %s159, %s160
      %p172 = scmp.eq.s32.totalorder %s24, 5
      %p173 = por %p171, %p172
      %p175 = scmp.ne.s32.totalorder %s160, %s174
      %p176 = scmp.eq.s32.totalorder %s24, 0
      %p177 = por %p175, %p176
      %s179 = sadd.s32 %s178, 1
      %p182 = scmp.eq.s32.totalorder %s18, 5
      %p183 = scmp.ne.s32.totalorder %s178, %s180
      %p184 = scmp.eq.s32.totalorder %s18, 0
      %p185 = por %p183, %p184
      %p186 = scmp.ne.s32.totalorder %s178, %s180
      %p187 = scmp.eq.s32.totalorder %s23, 5
      %p188 = por %p186, %p187
      %p189 = scmp.ne.s32.totalorder %s180, %s181
      %p190 = scmp.eq.s32.totalorder %s23, 0
      %p191 = por %p189, %p190
      %p192 = scmp.ne.s32.totalorder %s180, %s181
      %p193 = scmp.eq.s32.totalorder %s24, 5
      %p194 = por %p192, %p193
      %p196 = scmp.ne.s32.totalorder %s181, %s195
      %p197 = scmp.eq.s32.totalorder %s24, 0
      %p198 = por %p196, %p197
      %s200 = sadd.s32 %s199, 1
      %p203 = scmp.eq.s32.totalorder %s18, 5
      %p204 = scmp.ne.s32.totalorder %s199, %s201
      %p205 = scmp.eq.s32.totalorder %s18, 0
      %p206 = por %p204, %p205
      %p207 = scmp.ne.s32.totalorder %s199, %s201
      %p208 = scmp.eq.s32.totalorder %s23, 5
      %p209 = por %p207, %p208
      %p210 = scmp.ne.s32.totalorder %s201, %s202
      %p211 = scmp.eq.s32.totalorder %s23, 0
      %p212 = por %p210, %p211
      %p213 = scmp.ne.s32.totalorder %s201, %s202
      %p214 = scmp.eq.s32.totalorder %s24, 5
      %p215 = por %p213, %p214
      %p217 = scmp.ne.s32.totalorder %s202, %s216
      %p218 = scmp.eq.s32.totalorder %s24, 0
      %p219 = por %p217, %p218
      %s221 = sadd.s32 %s220, 1
      %p224 = scmp.eq.s32.totalorder %s18, 5
      %p225 = scmp.ne.s32.totalorder %s220, %s222
      %p226 = scmp.eq.s32.totalorder %s18, 0
      %p227 = por %p225, %p226
      %p228 = scmp.ne.s32.totalorder %s220, %s222
      %p229 = scmp.eq.s32.totalorder %s23, 5
      %p230 = por %p228, %p229
      %p231 = scmp.ne.s32.totalorder %s222, %s223
      %p232 = scmp.eq.s32.totalorder %s23, 0
      %p233 = por %p231, %p232
      %p234 = scmp.ne.s32.totalorder %s222, %s223
      %p235 = scmp.eq.s32.totalorder %s24, 5
      %p236 = por %p234, %p235
      %p238 = scmp.ne.s32.totalorder %s223, %s237
      %p239 = scmp.eq.s32.totalorder %s24, 0
      %p240 = por %p238, %p239
      %s242 = sadd.s32 %s241, 1
      %p245 = scmp.eq.s32.totalorder %s18, 5
      %p246 = scmp.ne.s32.totalorder %s241, %s243
      %p247 = scmp.eq.s32.totalorder %s18, 0
      %p248 = por %p246, %p247
      %p249 = scmp.ne.s32.totalorder %s241, %s243
      %p250 = scmp.eq.s32.totalorder %s23, 5
      %p251 = por %p249, %p250
      %p252 = scmp.ne.s32.totalorder %s243, %s244
      %p253 = scmp.eq.s32.totalorder %s23, 0
      %p254 = por %p252, %p253
      %p255 = scmp.ne.s32.totalorder %s243, %s244
      %p256 = scmp.eq.s32.totalorder %s24, 5
      %p257 = por %p255, %p256
      %p259 = scmp.ne.s32.totalorder %s244, %s258
      %p260 = scmp.eq.s32.totalorder %s24, 0
      %p261 = por %p259, %p260
      %s263 = sadd.s32 %s262, 1
      %p266 = scmp.eq.s32.totalorder %s18, 5
      %p267 = scmp.ne.s32.totalorder %s262, %s264
      %p268 = scmp.eq.s32.totalorder %s18, 0
      %p269 = por %p267, %p268
      %p270 = scmp.ne.s32.totalorder %s262, %s264
      %p271 = scmp.eq.s32.totalorder %s23, 5
      %p272 = por %p270, %p271
      %p273 = scmp.ne.s32.totalorder %s264, %s265
      %p274 = scmp.eq.s32.totalorder %s23, 0
      %p275 = por %p273, %p274
      %p276 = scmp.ne.s32.totalorder %s264, %s265
      %p277 = scmp.eq.s32.totalorder %s24, 5
      %p278 = por %p276, %p277
      %p280 = scmp.ne.s32.totalorder %s265, %s279
      %p281 = scmp.eq.s32.totalorder %s24, 0
      %p282 = por %p280, %p281
      %s284 = sadd.s32 %s283, 1
      %p287 = scmp.eq.s32.totalorder %s18, 5
      %p288 = scmp.ne.s32.totalorder %s283, %s285
      %p289 = scmp.eq.s32.totalorder %s18, 0
      %p290 = por %p288, %p289
      %p291 = scmp.ne.s32.totalorder %s283, %s285
      %p292 = scmp.eq.s32.totalorder %s23, 5
      %p293 = por %p291, %p292
      %p294 = scmp.ne.s32.totalorder %s285, %s286
      %p295 = scmp.eq.s32.totalorder %s23, 0
      %p296 = por %p294, %p295
      %p297 = scmp.ne.s32.totalorder %s285, %s286
      %p298 = scmp.eq.s32.totalorder %s24, 5
      %p299 = por %p297, %p298
      %p301 = scmp.ne.s32.totalorder %s286, %s300
      %p302 = scmp.eq.s32.totalorder %s24, 0
      %p303 = por %p301, %p302
      %p304 = scmp.le.s32.totalorder 1, %s18
      %p305 = scmp.lt.s32.totalorder %s18, 7
      %p306 = pnand %p304, %p305
      %p307 = pneg %p306
      // Predicated region
      $region9: #{tpu_custom_call.1} parent=5 // pred_check
        _
      $region10: #{tpu_custom_call.1} parent=5 // pred_check_branch
        %309 = sbr.rel (%p306) target = $region12
      $region11: #{tpu_custom_call.1} parent=5 // pred_region
        %s310 = ssub.s32 %s18, 1
        // Predicated region
        $region13: #{tpu_custom_call.1} parent=11 // pred_check
          %p311 = pneg %p86
        $region14: #{tpu_custom_call.1} parent=11 // pred_check_branch
          %313 = sbr.rel (%p311) target = $region16
        $region15: #{tpu_custom_call.1} parent=11 // pred_region
          _
        $region16: #{tpu_custom_call.1} parent=11 // pred_fallthru
          _
        // Predicated region
        $region17: #{tpu_custom_call.1} parent=11 // pred_check
          %p314 = pneg %p107
        $region18: #{tpu_custom_call.1} parent=11 // pred_check_branch
          %316 = sbr.rel (%p314) target = $region20
        $region19: #{tpu_custom_call.1} parent=11 // pred_region
          _
        $region20: #{tpu_custom_call.1} parent=11 // pred_fallthru
          _
        // Predicated region
        $region21: #{tpu_custom_call.1} parent=11 // pred_check
          %p317 = pneg %p128
        $region22: #{tpu_custom_call.1} parent=11 // pred_check_branch
          %319 = sbr.rel (%p317) target = $region24
        $region23: #{tpu_custom_call.1} parent=11 // pred_region
          _
        $region24: #{tpu_custom_call.1} parent=11 // pred_fallthru
          _
        // Predicated region
        $region25: #{tpu_custom_call.1} parent=11 // pred_check
          %p320 = pneg %p149
        $region26: #{tpu_custom_call.1} parent=11 // pred_check_branch
          %322 = sbr.rel (%p320) target = $region28
        $region27: #{tpu_custom_call.1} parent=11 // pred_region
          _
        $region28: #{tpu_custom_call.1} parent=11 // pred_fallthru
          _
        // Predicated region
        $region29: #{tpu_custom_call.1} parent=11 // pred_check
          %p323 = pneg %p170
        $region30: #{tpu_custom_call.1} parent=11 // pred_check_branch
          %325 = sbr.rel (%p323) target = $region32
        $region31: #{tpu_custom_call.1} parent=11 // pred_region
          _
        $region32: #{tpu_custom_call.1} parent=11 // pred_fallthru
          _
        // Predicated region
        $region33: #{tpu_custom_call.1} parent=11 // pred_check
          %p326 = pneg %p191
        $region34: #{tpu_custom_call.1} parent=11 // pred_check_branch
          %328 = sbr.rel (%p326) target = $region36
        $region35: #{tpu_custom_call.1} parent=11 // pred_region
          _
        $region36: #{tpu_custom_call.1} parent=11 // pred_fallthru
          _
        // Predicated region
        $region37: #{tpu_custom_call.1} parent=11 // pred_check
          %p329 = pneg %p212
        $region38: #{tpu_custom_call.1} parent=11 // pred_check_branch
          %331 = sbr.rel (%p329) target = $region40
        $region39: #{tpu_custom_call.1} parent=11 // pred_region
          _
        $region40: #{tpu_custom_call.1} parent=11 // pred_fallthru
          _
        // Predicated region
        $region41: #{tpu_custom_call.1} parent=11 // pred_check
          %p332 = pneg %p233
        $region42: #{tpu_custom_call.1} parent=11 // pred_check_branch
          %334 = sbr.rel (%p332) target = $region44
        $region43: #{tpu_custom_call.1} parent=11 // pred_region
          _
        $region44: #{tpu_custom_call.1} parent=11 // pred_fallthru
          _
        // Predicated region
        $region45: #{tpu_custom_call.1} parent=11 // pred_check
          %p335 = pneg %p254
        $region46: #{tpu_custom_call.1} parent=11 // pred_check_branch
          %337 = sbr.rel (%p335) target = $region48
        $region47: #{tpu_custom_call.1} parent=11 // pred_region
          _
        $region48: #{tpu_custom_call.1} parent=11 // pred_fallthru
          _
        // Predicated region
        $region49: #{tpu_custom_call.1} parent=11 // pred_check
          %p338 = pneg %p275
        $region50: #{tpu_custom_call.1} parent=11 // pred_check_branch
          %340 = sbr.rel (%p338) target = $region52
        $region51: #{tpu_custom_call.1} parent=11 // pred_region
          _
        $region52: #{tpu_custom_call.1} parent=11 // pred_fallthru
          _
      $region12: #{tpu_custom_call.1} parent=5 // pred_fallthru
        _
      %p341 = scmp.lt.s32.totalorder %s18, 6
      // Predicated region
      $region53: #{tpu_custom_call.1} parent=5 // pred_check
        %p342 = pneg %p341
      $region54: #{tpu_custom_call.1} parent=5 // pred_check_branch
        %344 = sbr.rel (%p342) target = $region56
      $region55: #{tpu_custom_call.1} parent=5 // pred_region
        // Predicated region
        $region57: #{tpu_custom_call.1} parent=55 // pred_check
          %p345 = pneg %p59
        $region58: #{tpu_custom_call.1} parent=55 // pred_check_branch
          %347 = sbr.rel (%p345) target = $region60
        $region59: #{tpu_custom_call.1} parent=55 // pred_region
          %s348 = smul.u32 32, %s27
          %p349 = scmp.lt.s32.totalorder %s26, 1
          %s350 = scalar_select %p349, %s26, 1
          %p351 = scmp.lt.s32.totalorder %s348, 31
          %s352 = scalar_select %p351, %s348, 31
          %s353 = smul.addr %s350, 32
          %s354 = sadd.s32 %s352, %s353
          %s355 = smul.addr %s354, 4
          %s356 = scalar_lea.vmem %s0, %s355
          %s357 = smul.u32 32, %s27
        $region60: #{tpu_custom_call.1} parent=55 // pred_fallthru
          _
      $region56: #{tpu_custom_call.1} parent=5 // pred_fallthru
        _
      %p358 = scmp.le.s32.totalorder 1, %s18
      %p359 = scmp.lt.s32.totalorder %s18, 7
      %p360 = pnand %p358, %p359
      %p361 = pneg %p360
      // Predicated region
      $region61: #{tpu_custom_call.1} parent=5 // pred_check
        _
      $region62: #{tpu_custom_call.1} parent=5 // pred_check_branch
        %363 = sbr.rel (%p360) target = $region64
      $region63: #{tpu_custom_call.1} parent=5 // pred_region
        %s364 = ssub.s32 %s18, 1
        %s365 = smul.u32 32, %s30
        %p366 = scmp.lt.s32.totalorder %s29, 1
        %s367 = scalar_select %p366, %s29, 1
        %p368 = scmp.lt.s32.totalorder %s365, 31
        %s369 = scalar_select %p368, %s365, 31
        %s370 = smul.addr %s367, 32
        %s371 = sadd.s32 %s369, %s370
        %s372 = smul.addr %s371, 4
        %s373 = scalar_lea.vmem %s0, %s372
        %p374 = pneg %p65
        %p375 = pneg %p62
        %p376 = pneg %p86
        %p377 = pneg %p83
        %p378 = pneg %p107
        %p379 = pneg %p104
        %p380 = pneg %p128
        %p381 = pneg %p125
        %p382 = pneg %p149
        %p383 = pneg %p146
        %p384 = pneg %p170
        %p385 = pneg %p167
        %p386 = pneg %p191
        %p387 = pneg %p188
        %p388 = pneg %p212
        %p389 = pneg %p209
        %p390 = pneg %p233
        %p391 = pneg %p230
        %p392 = pneg %p254
        %p393 = pneg %p251
        %p394 = pneg %p275
        %p395 = pneg %p272
        %p396 = pneg %p296
        %p397 = pneg %p293
        %s398 = smul.u32 32, %s30
        %p399 = scmp.lt.s32.totalorder %s29, 1
        %s400 = scalar_select %p399, %s29, 1
        %p401 = scmp.lt.s32.totalorder %s398, 31
        %s402 = scalar_select %p401, %s398, 31
        %s403 = smul.addr %s400, 32
        %s404 = sadd.s32 %s402, %s403
        %s405 = smul.addr %s404, 4
        %s406 = scalar_lea.vmem %s0, %s405
        %s407 = smul.u32 32, %s30
        %p409 = scmp.eq.s32.totalorder %s29, 0
        %p410 = scmp.eq.s32.totalorder %s30, 0
        %p411 = pnand %p409, %p410
        %p412 = pneg %p411
        %p413 = scmp.eq.s32.totalorder %s29, 1
        %p414 = pnand %p413, %p410
        %p415 = pneg %p414
        %v416 = vld [vmem:[%s406] sm:$0xf]
        %v417 = vld [vmem:[%s406 + $0x4] sm:$0xf]
        %v418 = vld [vmem:[%s406 + $0x8] sm:$0xf]
        %v419 = vld [vmem:[%s406 + $0xc] sm:$0xf]
        %v420 = vld [vmem:[%s406 + $0x10] sm:$0xf]
        %v421 = vld [vmem:[%s406 + $0x14] sm:$0xf]
        %v422 = vld [vmem:[%s406 + $0x18] sm:$0xf]
        %v423 = vld [vmem:[%s406 + $0x1c] sm:$0xf]
        %v424 = vld [vmem:[%s406 + $0x20] sm:$0xf]
        %v425 = vld [vmem:[%s406 + $0x24] sm:$0xf]
        %v426 = vld [vmem:[%s406 + $0x28] sm:$0xf]
        %v427 = vld [vmem:[%s406 + $0x2c] sm:$0xf]
        %v428 = vld [vmem:[%s406 + $0x30] sm:$0xf]
        %v429 = vld [vmem:[%s406 + $0x34] sm:$0xf]
        %v430 = vld [vmem:[%s406 + $0x38] sm:$0xf]
        %v431 = vld [vmem:[%s406 + $0x3c] sm:$0xf]
        %v432 = vld [vmem:[%s406 + $0x40] sm:$0xf]
        %v433 = vld [vmem:[%s406 + $0x44] sm:$0xf]
        %v434 = vld [vmem:[%s406 + $0x48] sm:$0xf]
        %v435 = vld [vmem:[%s406 + $0x4c] sm:$0xf]
        %v436 = vld [vmem:[%s406 + $0x50] sm:$0xf]
        %v437 = vld [vmem:[%s406 + $0x54] sm:$0xf]
        %v438 = vld [vmem:[%s406 + $0x58] sm:$0xf]
        %v439 = vld [vmem:[%s406 + $0x5c] sm:$0xf]
        %v440 = vld [vmem:[%s406 + $0x60] sm:$0xf]
        %v441 = vld [vmem:[%s406 + $0x64] sm:$0xf]
        %v442 = vld [vmem:[%s406 + $0x68] sm:$0xf]
        %v443 = vld [vmem:[%s406 + $0x6c] sm:$0xf]
        %v444 = vld [vmem:[%s406 + $0x70] sm:$0xf]
        %v445 = vld [vmem:[%s406 + $0x74] sm:$0xf]
        %v446 = vld [vmem:[%s406 + $0x78] sm:$0xf]
        %v447 = vld [vmem:[%s406 + $0x7c] sm:$0xf]
        %p448 = scmp.eq.s32.totalorder %s28, 0
        // Predicated region
        $region65: #{tpu_custom_call.1} parent=63 // pred_check
          %p449 = pneg %p448
        $region66: #{tpu_custom_call.1} parent=63 // pred_check_branch
          %451 = sbr.rel (%p449) target = $region68
        $region67: #{tpu_custom_call.1} parent=63 // pred_region
          // Predicated region
          $region69: #{tpu_custom_call.1} parent=67 // pred_check
            _
          $region70: #{tpu_custom_call.1} parent=67 // pred_check_branch
            %453 = sbr.rel (%p411) target = $region72
          $region71: #{tpu_custom_call.1} parent=67 // pred_region
            %vm454 = vcmask 516096
            %455 = vst.msk [vmem:[#allocation2] sm:$0x1] %vm454, 0.0
            %456 = vst.msk [vmem:[#allocation3] sm:$0x1] %vm454, 0.0
          $region72: #{tpu_custom_call.1} parent=67 // pred_fallthru
            _
          %v457 = vld [vmem:[%s1] sm:$0xf]
          %v458 = vld [vmem:[%s1 + $0x4] sm:$0xf]
          %v459 = vld [vmem:[%s1 + $0x8] sm:$0xf]
          %v460 = vld [vmem:[%s1 + $0xc] sm:$0xf]
          %v493 = vunpack.c.l.b16 %v416
          %v494 = vunpack.c.l.b16 %v417
          %v495 = vunpack.c.l.b16 %v418
          %v496 = vunpack.c.l.b16 %v419
          %v497 = vunpack.c.l.b16 %v420
          %v498 = vunpack.c.l.b16 %v421
          %v499 = vunpack.c.l.b16 %v422
          %v500 = vunpack.c.l.b16 %v423
          %v501 = vunpack.c.l.b16 %v424
          %v502 = vunpack.c.l.b16 %v425
          %v503 = vunpack.c.l.b16 %v426
          %v504 = vunpack.c.l.b16 %v427
          %v505 = vunpack.c.l.b16 %v428
          %v506 = vunpack.c.l.b16 %v429
          %v507 = vunpack.c.l.b16 %v430
          %v508 = vunpack.c.l.b16 %v431
          %v509 = vunpack.c.l.b16 %v432
          %v510 = vunpack.c.l.b16 %v433
          %v511 = vunpack.c.l.b16 %v434
          %v512 = vunpack.c.l.b16 %v435
          %v513 = vunpack.c.l.b16 %v436
          %v514 = vunpack.c.l.b16 %v437
          %v515 = vunpack.c.l.b16 %v438
          %v516 = vunpack.c.l.b16 %v439
          %v517 = vunpack.c.l.b16 %v440
          %v518 = vunpack.c.l.b16 %v441
          %v519 = vunpack.c.l.b16 %v442
          %v520 = vunpack.c.l.b16 %v443
          %v521 = vunpack.c.l.b16 %v444
          %v522 = vunpack.c.l.b16 %v445
          %v523 = vunpack.c.l.b16 %v446
          %v524 = vunpack.c.l.b16 %v447
          %v525 = vpack.c.b16 %v494, %v493
          %v526 = vpack.c.b16 %v496, %v495
          %v527 = vpack.c.b16 %v498, %v497
          %v528 = vpack.c.b16 %v500, %v499
          %v529 = vpack.c.b16 %v502, %v501
          %v530 = vpack.c.b16 %v504, %v503
          %v531 = vpack.c.b16 %v506, %v505
          %v532 = vpack.c.b16 %v508, %v507
          %v533 = vpack.c.b16 %v510, %v509
          %v534 = vpack.c.b16 %v512, %v511
          %v535 = vpack.c.b16 %v514, %v513
          %v536 = vpack.c.b16 %v516, %v515
          %v537 = vpack.c.b16 %v518, %v517
          %v538 = vpack.c.b16 %v520, %v519
          %v539 = vpack.c.b16 %v522, %v521
          %v540 = vpack.c.b16 %v524, %v523
          %v545 = vunpack.c.l.b16 %v457
          %v546 = vunpack.c.l.b16 %v458
          %v547 = vunpack.c.l.b16 %v459
          %v548 = vunpack.c.l.b16 %v460
          %v549 = vpack.c.b16 %v546, %v545
          %v550 = vpack.c.b16 %v548, %v547
          %vm553 = vcmask 261120
          %v555 = vsel %vm553, %v525, 0
          %v558 = vsel %vm553, %v526, 0
          %v561 = vsel %vm553, %v527, 0
          %v564 = vsel %vm553, %v528, 0
          %v567 = vsel %vm553, %v529, 0
          %v570 = vsel %vm553, %v530, 0
          %v573 = vsel %vm553, %v531, 0
          %v576 = vsel %vm553, %v532, 0
          %v579 = vsel %vm553, %v533, 0
          %v582 = vsel %vm553, %v534, 0
          %v585 = vsel %vm553, %v535, 0
          %v588 = vsel %vm553, %v536, 0
          %v591 = vsel %vm553, %v537, 0
          %v594 = vsel %vm553, %v538, 0
          %v597 = vsel %vm553, %v539, 0
          %v600 = vsel %vm553, %v540, 0
          %602 = vmatpush.bf16.msra.mxu0 0
          %603 = vmatpush.bf16.msra.mxu0 0
          %604 = vmatpush.bf16.msra.mxu0 0
          %605 = vmatpush.bf16.msra.mxu0 0
          %606 = vmatpush.bf16.msra.mxu0 0
          %607 = vmatpush.bf16.msra.mxu0 0
          %608 = vmatpush.bf16.msra.mxu0 %v550
          %609 = vmatpush.bf16.msra.mxu0 %v549
          %610 = vmatmul.bf16.gmra.mxu0 %v555
          %v611 = vpop.f32.mrf.mxu0
          %v612 = vadd.f32 0.0, %v611
          %v613 = vpop.f32.mrf.mxu0
          %v614 = vadd.f32 0.0, %v613
          %615 = vmatmul.bf16.gmra.mxu0 %v558
          %v616 = vpop.f32.mrf.mxu0
          %v617 = vadd.f32 0.0, %v616
          %v618 = vpop.f32.mrf.mxu0
          %v619 = vadd.f32 0.0, %v618
          %620 = vmatmul.bf16.gmra.mxu0 %v561
          %v621 = vpop.f32.mrf.mxu0
          %v622 = vadd.f32 0.0, %v621
          %v623 = vpop.f32.mrf.mxu0
          %v624 = vadd.f32 0.0, %v623
          %625 = vmatmul.bf16.gmra.mxu0 %v564
          %v626 = vpop.f32.mrf.mxu0
          %v627 = vadd.f32 0.0, %v626
          %v628 = vpop.f32.mrf.mxu0
          %v629 = vadd.f32 0.0, %v628
          %630 = vmatmul.bf16.gmra.mxu0 %v567
          %v631 = vpop.f32.mrf.mxu0
          %v632 = vadd.f32 0.0, %v631
          %v633 = vpop.f32.mrf.mxu0
          %v634 = vadd.f32 0.0, %v633
          %635 = vmatmul.bf16.gmra.mxu0 %v570
          %v636 = vpop.f32.mrf.mxu0
          %v637 = vadd.f32 0.0, %v636
          %v638 = vpop.f32.mrf.mxu0
          %v639 = vadd.f32 0.0, %v638
          %640 = vmatmul.bf16.gmra.mxu0 %v573
          %v641 = vpop.f32.mrf.mxu0
          %v642 = vadd.f32 0.0, %v641
          %v643 = vpop.f32.mrf.mxu0
          %v644 = vadd.f32 0.0, %v643
          %645 = vmatmul.bf16.gmra.mxu0 %v576
          %v646 = vpop.f32.mrf.mxu0
          %v647 = vadd.f32 0.0, %v646
          %v648 = vpop.f32.mrf.mxu0
          %v649 = vadd.f32 0.0, %v648
          %650 = vmatmul.bf16.gmra.mxu0 %v579
          %v651 = vpop.f32.mrf.mxu0
          %v652 = vadd.f32 0.0, %v651
          %v653 = vpop.f32.mrf.mxu0
          %v654 = vadd.f32 0.0, %v653
          %655 = vmatmul.bf16.gmra.mxu0 %v582
          %v656 = vpop.f32.mrf.mxu0
          %v657 = vadd.f32 0.0, %v656
          %v658 = vpop.f32.mrf.mxu0
          %v659 = vadd.f32 0.0, %v658
          %660 = vmatmul.bf16.gmra.mxu0 %v585
          %v661 = vpop.f32.mrf.mxu0
          %v662 = vadd.f32 0.0, %v661
          %v663 = vpop.f32.mrf.mxu0
          %v664 = vadd.f32 0.0, %v663
          %665 = vmatmul.bf16.gmra.mxu0 %v588
          %v666 = vpop.f32.mrf.mxu0
          %v667 = vadd.f32 0.0, %v666
          %v668 = vpop.f32.mrf.mxu0
          %v669 = vadd.f32 0.0, %v668
          %670 = vmatmul.bf16.gmra.mxu0 %v591
          %v671 = vpop.f32.mrf.mxu0
          %v672 = vadd.f32 0.0, %v671
          %v673 = vpop.f32.mrf.mxu0
          %v674 = vadd.f32 0.0, %v673
          %675 = vmatmul.bf16.gmra.mxu0 %v594
          %v676 = vpop.f32.mrf.mxu0
          %v677 = vadd.f32 0.0, %v676
          %v678 = vpop.f32.mrf.mxu0
          %v679 = vadd.f32 0.0, %v678
          %680 = vmatmul.bf16.gmra.mxu0 %v597
          %v681 = vpop.f32.mrf.mxu0
          %v682 = vadd.f32 0.0, %v681
          %v683 = vpop.f32.mrf.mxu0
          %v684 = vadd.f32 0.0, %v683
          %685 = vmatmul.bf16.gmra.mxu0 %v600
          %v686 = vpop.f32.mrf.mxu0
          %v687 = vadd.f32 0.0, %v686
          %v688 = vpop.f32.mrf.mxu0
          %v689 = vadd.f32 0.0, %v688
          %690 = vdwg.mxu0
          %v691 = vld [vmem:[#allocation2] sm:$0x1]
          %vm692 = vcmask 523264
          %v693 = vsel %vm692, %v612, 0.0
          %v694 = vsel %vm692, %v614, 0.0
          %v695 = vadd.f32 %v693, %v694
          %v696 = vsel %vm692, %v617, 0.0
          %v697 = vadd.f32 %v695, %v696
          %v698 = vsel %vm692, %v619, 0.0
          %v699 = vadd.f32 %v697, %v698
          %v700 = vsel %vm692, %v622, 0.0
          %v701 = vadd.f32 %v699, %v700
          %v702 = vsel %vm692, %v624, 0.0
          %v703 = vadd.f32 %v701, %v702
          %v704 = vsel %vm692, %v627, 0.0
          %v705 = vadd.f32 %v703, %v704
          %v706 = vsel %vm692, %v629, 0.0
          %v707 = vadd.f32 %v705, %v706
          %v708 = vsel %vm692, %v632, 0.0
          %v709 = vadd.f32 %v707, %v708
          %v710 = vsel %vm692, %v634, 0.0
          %v711 = vadd.f32 %v709, %v710
          %v712 = vsel %vm692, %v637, 0.0
          %v713 = vadd.f32 %v711, %v712
          %v714 = vsel %vm692, %v639, 0.0
          %v715 = vadd.f32 %v713, %v714
          %v716 = vsel %vm692, %v642, 0.0
          %v717 = vadd.f32 %v715, %v716
          %v718 = vsel %vm692, %v644, 0.0
          %v719 = vadd.f32 %v717, %v718
          %v720 = vsel %vm692, %v647, 0.0
          %v721 = vadd.f32 %v719, %v720
          %v722 = vsel %vm692, %v649, 0.0
          %v723 = vadd.f32 %v721, %v722
          %v724 = vsel %vm692, %v652, 0.0
          %v725 = vadd.f32 %v723, %v724
          %v726 = vsel %vm692, %v654, 0.0
          %v727 = vadd.f32 %v725, %v726
          %v728 = vsel %vm692, %v657, 0.0
          %v729 = vadd.f32 %v727, %v728
          %v730 = vsel %vm692, %v659, 0.0
          %v731 = vadd.f32 %v729, %v730
          %v732 = vsel %vm692, %v662, 0.0
          %v733 = vadd.f32 %v731, %v732
          %v734 = vsel %vm692, %v664, 0.0
          %v735 = vadd.f32 %v733, %v734
          %v736 = vsel %vm692, %v667, 0.0
          %v737 = vadd.f32 %v735, %v736
          %v738 = vsel %vm692, %v669, 0.0
          %v739 = vadd.f32 %v737, %v738
          %v740 = vsel %vm692, %v672, 0.0
          %v741 = vadd.f32 %v739, %v740
          %v742 = vsel %vm692, %v674, 0.0
          %v743 = vadd.f32 %v741, %v742
          %v744 = vsel %vm692, %v677, 0.0
          %v745 = vadd.f32 %v743, %v744
          %v746 = vsel %vm692, %v679, 0.0
          %v747 = vadd.f32 %v745, %v746
          %v748 = vsel %vm692, %v682, 0.0
          %v749 = vadd.f32 %v747, %v748
          %v750 = vsel %vm692, %v684, 0.0
          %v751 = vadd.f32 %v749, %v750
          %v752 = vsel %vm692, %v687, 0.0
          %v753 = vadd.f32 %v751, %v752
          %v754 = vsel %vm692, %v689, 0.0
          %v755 = vadd.f32 %v753, %v754
          %v756 = vrot.slane %v755, 4
          %v757 = vadd.f32 %v755, %v756
          %v758 = vrot.slane %v757, 2
          %v759 = vadd.f32 %v757, %v758
          %v760 = vrot.slane %v759, 1
          %v761 = vadd.f32 %v759, %v760
          %v762 = vadd.f32 %v691, %v761
          %vm763 = vcmask 516096
          %764 = vst.msk [vmem:[#allocation2] sm:$0x1] %vm763, %v762
          %v765 = vld [vmem:[#allocation3] sm:$0x1]
          %v766 = vmul.f32 %v612, %v612
          %v767 = vmul.f32 %v614, %v614
          %v768 = vmul.f32 %v617, %v617
          %v769 = vmul.f32 %v619, %v619
          %v770 = vmul.f32 %v622, %v622
          %v771 = vmul.f32 %v624, %v624
          %v772 = vmul.f32 %v627, %v627
          %v773 = vmul.f32 %v629, %v629
          %v774 = vmul.f32 %v632, %v632
          %v775 = vmul.f32 %v634, %v634
          %v776 = vmul.f32 %v637, %v637
          %v777 = vmul.f32 %v639, %v639
          %v778 = vmul.f32 %v642, %v642
          %v779 = vmul.f32 %v644, %v644
          %v780 = vmul.f32 %v647, %v647
          %v781 = vmul.f32 %v649, %v649
          %v782 = vmul.f32 %v652, %v652
          %v783 = vmul.f32 %v654, %v654
          %v784 = vmul.f32 %v657, %v657
          %v785 = vmul.f32 %v659, %v659
          %v786 = vmul.f32 %v662, %v662
          %v787 = vmul.f32 %v664, %v664
          %v788 = vmul.f32 %v667, %v667
          %v789 = vmul.f32 %v669, %v669
          %v790 = vmul.f32 %v672, %v672
          %v791 = vmul.f32 %v674, %v674
          %v792 = vmul.f32 %v677, %v677
          %v793 = vmul.f32 %v679, %v679
          %v794 = vmul.f32 %v682, %v682
          %v795 = vmul.f32 %v684, %v684
          %v796 = vmul.f32 %v687, %v687
          %v797 = vmul.f32 %v689, %v689
          %v798 = vsel %vm692, %v766, 0.0
          %v799 = vsel %vm692, %v767, 0.0
          %v800 = vadd.f32 %v798, %v799
          %v801 = vsel %vm692, %v768, 0.0
          %v802 = vadd.f32 %v800, %v801
          %v803 = vsel %vm692, %v769, 0.0
          %v804 = vadd.f32 %v802, %v803
          %v805 = vsel %vm692, %v770, 0.0
          %v806 = vadd.f32 %v804, %v805
          %v807 = vsel %vm692, %v771, 0.0
          %v808 = vadd.f32 %v806, %v807
          %v809 = vsel %vm692, %v772, 0.0
          %v810 = vadd.f32 %v808, %v809
          %v811 = vsel %vm692, %v773, 0.0
          %v812 = vadd.f32 %v810, %v811
          %v813 = vsel %vm692, %v774, 0.0
          %v814 = vadd.f32 %v812, %v813
          %v815 = vsel %vm692, %v775, 0.0
          %v816 = vadd.f32 %v814, %v815
          %v817 = vsel %vm692, %v776, 0.0
          %v818 = vadd.f32 %v816, %v817
          %v819 = vsel %vm692, %v777, 0.0
          %v820 = vadd.f32 %v818, %v819
          %v821 = vsel %vm692, %v778, 0.0
          %v822 = vadd.f32 %v820, %v821
          %v823 = vsel %vm692, %v779, 0.0
          %v824 = vadd.f32 %v822, %v823
          %v825 = vsel %vm692, %v780, 0.0
          %v826 = vadd.f32 %v824, %v825
          %v827 = vsel %vm692, %v781, 0.0
          %v828 = vadd.f32 %v826, %v827
          %v829 = vsel %vm692, %v782, 0.0
          %v830 = vadd.f32 %v828, %v829
          %v831 = vsel %vm692, %v783, 0.0
          %v832 = vadd.f32 %v830, %v831
          %v833 = vsel %vm692, %v784, 0.0
          %v834 = vadd.f32 %v832, %v833
          %v835 = vsel %vm692, %v785, 0.0
          %v836 = vadd.f32 %v834, %v835
          %v837 = vsel %vm692, %v786, 0.0
          %v838 = vadd.f32 %v836, %v837
          %v839 = vsel %vm692, %v787, 0.0
          %v840 = vadd.f32 %v838, %v839
          %v841 = vsel %vm692, %v788, 0.0
          %v842 = vadd.f32 %v840, %v841
          %v843 = vsel %vm692, %v789, 0.0
          %v844 = vadd.f32 %v842, %v843
          %v845 = vsel %vm692, %v790, 0.0
          %v846 = vadd.f32 %v844, %v845
          %v847 = vsel %vm692, %v791, 0.0
          %v848 = vadd.f32 %v846, %v847
          %v849 = vsel %vm692, %v792, 0.0
          %v850 = vadd.f32 %v848, %v849
          %v851 = vsel %vm692, %v793, 0.0
          %v852 = vadd.f32 %v850, %v851
          %v853 = vsel %vm692, %v794, 0.0
          %v854 = vadd.f32 %v852, %v853
          %v855 = vsel %vm692, %v795, 0.0
          %v856 = vadd.f32 %v854, %v855
          %v857 = vsel %vm692, %v796, 0.0
          %v858 = vadd.f32 %v856, %v857
          %v859 = vsel %vm692, %v797, 0.0
          %v860 = vadd.f32 %v858, %v859
          %v861 = vrot.slane %v860, 4
          %v862 = vadd.f32 %v860, %v861
          %v863 = vrot.slane %v862, 2
          %v864 = vadd.f32 %v862, %v863
          %v865 = vrot.slane %v864, 1
          %v866 = vadd.f32 %v864, %v865
          %v867 = vadd.f32 %v765, %v866
          %868 = vst.msk [vmem:[#allocation3] sm:$0x1] %vm763, %v867
        $region68: #{tpu_custom_call.1} parent=63 // pred_fallthru
          _
        %p869 = scmp.eq.s32.totalorder %s28, 1
        // Predicated region
        $region73: #{tpu_custom_call.1} parent=63 // pred_check
          %p870 = pneg %p869
        $region74: #{tpu_custom_call.1} parent=63 // pred_check_branch
          %872 = sbr.rel (%p870) target = $region76
        $region75: #{tpu_custom_call.1} parent=63 // pred_region
          // Predicated region
          $region77: #{tpu_custom_call.1} parent=75 // pred_check
            _
          $region78: #{tpu_custom_call.1} parent=75 // pred_check_branch
            %874 = sbr.rel (%p411) target = $region80
          $region79: #{tpu_custom_call.1} parent=75 // pred_region
            %vm875 = vcmask 516096
            %876 = vst.msk [vmem:[#allocation4] sm:$0x1] %vm875, 0.0
            %877 = vst.msk [vmem:[#allocation5] sm:$0x1] %vm875, 0.0
          $region80: #{tpu_custom_call.1} parent=75 // pred_fallthru
            _
          %v878 = vld [vmem:[#allocation2] sm:$0x1]
          %v879 = vmul.f32 %v878, 0.001953125
          %v880 = vld [vmem:[#allocation3] sm:$0x1]
          %v881 = vmul.f32 %v880, 0.001953125
          %v882 = vmul.f32 %v879, %v879
          %v883 = vsub.f32 %v881, %v882
          %v884 = vadd.f32 %v883, 1e-05
          %v885 = vrsqrt.pop %v884
          %v886 = vmul.f32 %v885, %v884
          %v887 = vmul.f32 %v886, %v885
          %v888 = vmul.f32 0.5, %v887
          %v889 = vsub.f32 1.5, %v888
          %v890 = vmul.f32 %v885, %v889
          %vm891 = vweird.f32 %v884
          %vm892 = vweird.f32 %v885
          %vm893 = vmor %vm891, %vm892
          %v894 = vsel %vm893, %v885, %v890
          %v895 = vld [vmem:[%s2] sm:$0x1]
          %v896 = vmul.f32 %v895, %v894
          %v897 = vld [vmem:[%s3] sm:$0x1]
          %v898 = vmul.f32 %v879, %v896
          %v899 = vsub.f32 %v897, %v898
          %v900 = vld [vmem:[%s1] sm:$0xf]
          %v901 = vld [vmem:[%s1 + $0x4] sm:$0xf]
          %v902 = vld [vmem:[%s1 + $0x8] sm:$0xf]
          %v903 = vld [vmem:[%s1 + $0xc] sm:$0xf]
          %v936 = vunpack.c.l.b16 %v416
          %v937 = vunpack.c.l.b16 %v417
          %v938 = vunpack.c.l.b16 %v418
          %v939 = vunpack.c.l.b16 %v419
          %v940 = vunpack.c.l.b16 %v420
          %v941 = vunpack.c.l.b16 %v421
          %v942 = vunpack.c.l.b16 %v422
          %v943 = vunpack.c.l.b16 %v423
          %v944 = vunpack.c.l.b16 %v424
          %v945 = vunpack.c.l.b16 %v425
          %v946 = vunpack.c.l.b16 %v426
          %v947 = vunpack.c.l.b16 %v427
          %v948 = vunpack.c.l.b16 %v428
          %v949 = vunpack.c.l.b16 %v429
          %v950 = vunpack.c.l.b16 %v430
          %v951 = vunpack.c.l.b16 %v431
          %v952 = vunpack.c.l.b16 %v432
          %v953 = vunpack.c.l.b16 %v433
          %v954 = vunpack.c.l.b16 %v434
          %v955 = vunpack.c.l.b16 %v435
          %v956 = vunpack.c.l.b16 %v436
          %v957 = vunpack.c.l.b16 %v437
          %v958 = vunpack.c.l.b16 %v438
          %v959 = vunpack.c.l.b16 %v439
          %v960 = vunpack.c.l.b16 %v440
          %v961 = vunpack.c.l.b16 %v441
          %v962 = vunpack.c.l.b16 %v442
          %v963 = vunpack.c.l.b16 %v443
          %v964 = vunpack.c.l.b16 %v444
          %v965 = vunpack.c.l.b16 %v445
          %v966 = vunpack.c.l.b16 %v446
          %v967 = vunpack.c.l.b16 %v447
          %v968 = vpack.c.b16 %v937, %v936
          %v969 = vpack.c.b16 %v939, %v938
          %v970 = vpack.c.b16 %v941, %v940
          %v971 = vpack.c.b16 %v943, %v942
          %v972 = vpack.c.b16 %v945, %v944
          %v973 = vpack.c.b16 %v947, %v946
          %v974 = vpack.c.b16 %v949, %v948
          %v975 = vpack.c.b16 %v951, %v950
          %v976 = vpack.c.b16 %v953, %v952
          %v977 = vpack.c.b16 %v955, %v954
          %v978 = vpack.c.b16 %v957, %v956
          %v979 = vpack.c.b16 %v959, %v958
          %v980 = vpack.c.b16 %v961, %v960
          %v981 = vpack.c.b16 %v963, %v962
          %v982 = vpack.c.b16 %v965, %v964
          %v983 = vpack.c.b16 %v967, %v966
          %v988 = vunpack.c.l.b16 %v900
          %v989 = vunpack.c.l.b16 %v901
          %v990 = vunpack.c.l.b16 %v902
          %v991 = vunpack.c.l.b16 %v903
          %v992 = vpack.c.b16 %v989, %v988
          %v993 = vpack.c.b16 %v991, %v990
          %vm996 = vcmask 261120
          %v998 = vsel %vm996, %v968, 0
          %v1001 = vsel %vm996, %v969, 0
          %v1004 = vsel %vm996, %v970, 0
          %v1007 = vsel %vm996, %v971, 0
          %v1010 = vsel %vm996, %v972, 0
          %v1013 = vsel %vm996, %v973, 0
          %v1016 = vsel %vm996, %v974, 0
          %v1019 = vsel %vm996, %v975, 0
          %v1022 = vsel %vm996, %v976, 0
          %v1025 = vsel %vm996, %v977, 0
          %v1028 = vsel %vm996, %v978, 0
          %v1031 = vsel %vm996, %v979, 0
          %v1034 = vsel %vm996, %v980, 0
          %v1037 = vsel %vm996, %v981, 0
          %v1040 = vsel %vm996, %v982, 0
          %v1043 = vsel %vm996, %v983, 0
          %1045 = vmatpush.bf16.msra.mxu0 0
          %1046 = vmatpush.bf16.msra.mxu0 0
          %1047 = vmatpush.bf16.msra.mxu0 0
          %1048 = vmatpush.bf16.msra.mxu0 0
          %1049 = vmatpush.bf16.msra.mxu0 0
          %1050 = vmatpush.bf16.msra.mxu0 0
          %1051 = vmatpush.bf16.msra.mxu0 %v993
          %1052 = vmatpush.bf16.msra.mxu0 %v992
          %1053 = vmatmul.bf16.gmra.mxu0 %v998
          %v1054 = vpop.f32.mrf.mxu0
          %v1055 = vadd.f32 0.0, %v1054
          %v1056 = vpop.f32.mrf.mxu0
          %v1057 = vadd.f32 0.0, %v1056
          %1058 = vmatmul.bf16.gmra.mxu0 %v1001
          %v1059 = vpop.f32.mrf.mxu0
          %v1060 = vadd.f32 0.0, %v1059
          %v1061 = vpop.f32.mrf.mxu0
          %v1062 = vadd.f32 0.0, %v1061
          %1063 = vmatmul.bf16.gmra.mxu0 %v1004
          %v1064 = vpop.f32.mrf.mxu0
          %v1065 = vadd.f32 0.0, %v1064
          %v1066 = vpop.f32.mrf.mxu0
          %v1067 = vadd.f32 0.0, %v1066
          %1068 = vmatmul.bf16.gmra.mxu0 %v1007
          %v1069 = vpop.f32.mrf.mxu0
          %v1070 = vadd.f32 0.0, %v1069
          %v1071 = vpop.f32.mrf.mxu0
          %v1072 = vadd.f32 0.0, %v1071
          %1073 = vmatmul.bf16.gmra.mxu0 %v1010
          %v1074 = vpop.f32.mrf.mxu0
          %v1075 = vadd.f32 0.0, %v1074
          %v1076 = vpop.f32.mrf.mxu0
          %v1077 = vadd.f32 0.0, %v1076
          %1078 = vmatmul.bf16.gmra.mxu0 %v1013
          %v1079 = vpop.f32.mrf.mxu0
          %v1080 = vadd.f32 0.0, %v1079
          %v1081 = vpop.f32.mrf.mxu0
          %v1082 = vadd.f32 0.0, %v1081
          %1083 = vmatmul.bf16.gmra.mxu0 %v1016
          %v1084 = vpop.f32.mrf.mxu0
          %v1085 = vadd.f32 0.0, %v1084
          %v1086 = vpop.f32.mrf.mxu0
          %v1087 = vadd.f32 0.0, %v1086
          %1088 = vmatmul.bf16.gmra.mxu0 %v1019
          %v1089 = vpop.f32.mrf.mxu0
          %v1090 = vadd.f32 0.0, %v1089
          %v1091 = vpop.f32.mrf.mxu0
          %v1092 = vadd.f32 0.0, %v1091
          %1093 = vmatmul.bf16.gmra.mxu0 %v1022
          %v1094 = vpop.f32.mrf.mxu0
          %v1095 = vadd.f32 0.0, %v1094
          %v1096 = vpop.f32.mrf.mxu0
          %v1097 = vadd.f32 0.0, %v1096
          %1098 = vmatmul.bf16.gmra.mxu0 %v1025
          %v1099 = vpop.f32.mrf.mxu0
          %v1100 = vadd.f32 0.0, %v1099
          %v1101 = vpop.f32.mrf.mxu0
          %v1102 = vadd.f32 0.0, %v1101
          %1103 = vmatmul.bf16.gmra.mxu0 %v1028
          %v1104 = vpop.f32.mrf.mxu0
          %v1105 = vadd.f32 0.0, %v1104
          %v1106 = vpop.f32.mrf.mxu0
          %v1107 = vadd.f32 0.0, %v1106
          %1108 = vmatmul.bf16.gmra.mxu0 %v1031
          %v1109 = vpop.f32.mrf.mxu0
          %v1110 = vadd.f32 0.0, %v1109
          %v1111 = vpop.f32.mrf.mxu0
          %v1112 = vadd.f32 0.0, %v1111
          %1113 = vmatmul.bf16.gmra.mxu0 %v1034
          %v1114 = vpop.f32.mrf.mxu0
          %v1115 = vadd.f32 0.0, %v1114
          %v1116 = vpop.f32.mrf.mxu0
          %v1117 = vadd.f32 0.0, %v1116
          %1118 = vmatmul.bf16.gmra.mxu0 %v1037
          %v1119 = vpop.f32.mrf.mxu0
          %v1120 = vadd.f32 0.0, %v1119
          %v1121 = vpop.f32.mrf.mxu0
          %v1122 = vadd.f32 0.0, %v1121
          %1123 = vmatmul.bf16.gmra.mxu0 %v1040
          %v1124 = vpop.f32.mrf.mxu0
          %v1125 = vadd.f32 0.0, %v1124
          %v1126 = vpop.f32.mrf.mxu0
          %v1127 = vadd.f32 0.0, %v1126
          %1128 = vmatmul.bf16.gmra.mxu0 %v1043
          %v1129 = vpop.f32.mrf.mxu0
          %v1130 = vadd.f32 0.0, %v1129
          %v1131 = vpop.f32.mrf.mxu0
          %v1132 = vadd.f32 0.0, %v1131
          %1133 = vdwg.mxu0
          %v1135 = vperm.slane %v896, 0
          %v1137 = vmul.f32 %v1055, %v1135
          %v1138 = vmul.f32 %v1057, %v1135
          %v1139 = vmul.f32 %v1060, %v1135
          %v1140 = vmul.f32 %v1062, %v1135
          %v1141 = vmul.f32 %v1065, %v1135
          %v1142 = vmul.f32 %v1067, %v1135
          %v1143 = vmul.f32 %v1070, %v1135
          %v1144 = vmul.f32 %v1072, %v1135
          %v1145 = vmul.f32 %v1075, %v1135
          %v1146 = vmul.f32 %v1077, %v1135
          %v1147 = vmul.f32 %v1080, %v1135
          %v1148 = vmul.f32 %v1082, %v1135
          %v1149 = vmul.f32 %v1085, %v1135
          %v1150 = vmul.f32 %v1087, %v1135
          %v1151 = vmul.f32 %v1090, %v1135
          %v1152 = vmul.f32 %v1092, %v1135
          %v1153 = vmul.f32 %v1095, %v1135
          %v1154 = vmul.f32 %v1097, %v1135
          %v1155 = vmul.f32 %v1100, %v1135
          %v1156 = vmul.f32 %v1102, %v1135
          %v1157 = vmul.f32 %v1105, %v1135
          %v1158 = vmul.f32 %v1107, %v1135
          %v1159 = vmul.f32 %v1110, %v1135
          %v1160 = vmul.f32 %v1112, %v1135
          %v1161 = vmul.f32 %v1115, %v1135
          %v1162 = vmul.f32 %v1117, %v1135
          %v1163 = vmul.f32 %v1120, %v1135
          %v1164 = vmul.f32 %v1122, %v1135
          %v1165 = vmul.f32 %v1125, %v1135
          %v1166 = vmul.f32 %v1127, %v1135
          %v1167 = vmul.f32 %v1130, %v1135
          %v1168 = vmul.f32 %v1132, %v1135
          %v1170 = vperm.slane %v899, 0
          %v1172 = vadd.f32 %v1137, %v1170
          %v1173 = vadd.f32 %v1138, %v1170
          %v1174 = vadd.f32 %v1139, %v1170
          %v1175 = vadd.f32 %v1140, %v1170
          %v1176 = vadd.f32 %v1141, %v1170
          %v1177 = vadd.f32 %v1142, %v1170
          %v1178 = vadd.f32 %v1143, %v1170
          %v1179 = vadd.f32 %v1144, %v1170
          %v1180 = vadd.f32 %v1145, %v1170
          %v1181 = vadd.f32 %v1146, %v1170
          %v1182 = vadd.f32 %v1147, %v1170
          %v1183 = vadd.f32 %v1148, %v1170
          %v1184 = vadd.f32 %v1149, %v1170
          %v1185 = vadd.f32 %v1150, %v1170
          %v1186 = vadd.f32 %v1151, %v1170
          %v1187 = vadd.f32 %v1152, %v1170
          %v1188 = vadd.f32 %v1153, %v1170
          %v1189 = vadd.f32 %v1154, %v1170
          %v1190 = vadd.f32 %v1155, %v1170
          %v1191 = vadd.f32 %v1156, %v1170
          %v1192 = vadd.f32 %v1157, %v1170
          %v1193 = vadd.f32 %v1158, %v1170
          %v1194 = vadd.f32 %v1159, %v1170
          %v1195 = vadd.f32 %v1160, %v1170
          %v1196 = vadd.f32 %v1161, %v1170
          %v1197 = vadd.f32 %v1162, %v1170
          %v1198 = vadd.f32 %v1163, %v1170
          %v1199 = vadd.f32 %v1164, %v1170
          %v1200 = vadd.f32 %v1165, %v1170
          %v1201 = vadd.f32 %v1166, %v1170
          %v1202 = vadd.f32 %v1167, %v1170
          %v1203 = vadd.f32 %v1168, %v1170
          %v1204 = vmax.f32 %v1172, 0.0
          %v1205 = vmax.f32 %v1173, 0.0
          %v1206 = vmax.f32 %v1174, 0.0
          %v1207 = vmax.f32 %v1175, 0.0
          %v1208 = vmax.f32 %v1176, 0.0
          %v1209 = vmax.f32 %v1177, 0.0
          %v1210 = vmax.f32 %v1178, 0.0
          %v1211 = vmax.f32 %v1179, 0.0
          %v1212 = vmax.f32 %v1180, 0.0
          %v1213 = vmax.f32 %v1181, 0.0
          %v1214 = vmax.f32 %v1182, 0.0
          %v1215 = vmax.f32 %v1183, 0.0
          %v1216 = vmax.f32 %v1184, 0.0
          %v1217 = vmax.f32 %v1185, 0.0
          %v1218 = vmax.f32 %v1186, 0.0
          %v1219 = vmax.f32 %v1187, 0.0
          %v1220 = vmax.f32 %v1188, 0.0
          %v1221 = vmax.f32 %v1189, 0.0
          %v1222 = vmax.f32 %v1190, 0.0
          %v1223 = vmax.f32 %v1191, 0.0
          %v1224 = vmax.f32 %v1192, 0.0
          %v1225 = vmax.f32 %v1193, 0.0
          %v1226 = vmax.f32 %v1194, 0.0
          %v1227 = vmax.f32 %v1195, 0.0
          %v1228 = vmax.f32 %v1196, 0.0
          %v1229 = vmax.f32 %v1197, 0.0
          %v1230 = vmax.f32 %v1198, 0.0
          %v1231 = vmax.f32 %v1199, 0.0
          %v1232 = vmax.f32 %v1200, 0.0
          %v1233 = vmax.f32 %v1201, 0.0
          %v1234 = vmax.f32 %v1202, 0.0
          %v1235 = vmax.f32 %v1203, 0.0
          %v1236 = vpack.c.bf16 %v1205, %v1204
          %v1237 = vpack.c.bf16 %v1207, %v1206
          %v1238 = vpack.c.bf16 %v1209, %v1208
          %v1239 = vpack.c.bf16 %v1211, %v1210
          %v1240 = vpack.c.bf16 %v1213, %v1212
          %v1241 = vpack.c.bf16 %v1215, %v1214
          %v1242 = vpack.c.bf16 %v1217, %v1216
          %v1243 = vpack.c.bf16 %v1219, %v1218
          %v1244 = vpack.c.bf16 %v1221, %v1220
          %v1245 = vpack.c.bf16 %v1223, %v1222
          %v1246 = vpack.c.bf16 %v1225, %v1224
          %v1247 = vpack.c.bf16 %v1227, %v1226
          %v1248 = vpack.c.bf16 %v1229, %v1228
          %v1249 = vpack.c.bf16 %v1231, %v1230
          %v1250 = vpack.c.bf16 %v1233, %v1232
          %v1251 = vpack.c.bf16 %v1235, %v1234
          %v1252 = vld [vmem:[%s4] sm:$0xf]
          %v1253 = vld [vmem:[%s4 + $0x4] sm:$0xf]
          %v1254 = vld [vmem:[%s4 + $0x8] sm:$0xf]
          %v1255 = vld [vmem:[%s4 + $0xc] sm:$0xf]
          %v1256 = vld [vmem:[%s4 + $0x10] sm:$0xf]
          %v1257 = vld [vmem:[%s4 + $0x14] sm:$0xf]
          %v1258 = vld [vmem:[%s4 + $0x18] sm:$0xf]
          %v1259 = vld [vmem:[%s4 + $0x1c] sm:$0xf]
          %v1268 = vunpack.c.l.b16 %v1252
          %v1269 = vunpack.c.l.b16 %v1253
          %v1270 = vunpack.c.l.b16 %v1254
          %v1271 = vunpack.c.l.b16 %v1255
          %v1272 = vunpack.c.l.b16 %v1256
          %v1273 = vunpack.c.l.b16 %v1257
          %v1274 = vunpack.c.l.b16 %v1258
          %v1275 = vunpack.c.l.b16 %v1259
          %v1276 = vpack.c.b16 %v1269, %v1268
          %v1277 = vpack.c.b16 %v1271, %v1270
          %v1278 = vpack.c.b16 %v1273, %v1272
          %v1279 = vpack.c.b16 %v1275, %v1274
          %vm1284 = vcmask 523264
          %v1286 = vsel %vm1284, %v1236, 0
          %v1289 = vsel %vm1284, %v1237, 0
          %v1292 = vsel %vm1284, %v1238, 0
          %v1295 = vsel %vm1284, %v1239, 0
          %v1298 = vsel %vm1284, %v1240, 0
          %v1301 = vsel %vm1284, %v1241, 0
          %v1304 = vsel %vm1284, %v1242, 0
          %v1307 = vsel %vm1284, %v1243, 0
          %v1310 = vsel %vm1284, %v1244, 0
          %v1313 = vsel %vm1284, %v1245, 0
          %v1316 = vsel %vm1284, %v1246, 0
          %v1319 = vsel %vm1284, %v1247, 0
          %v1322 = vsel %vm1284, %v1248, 0
          %v1325 = vsel %vm1284, %v1249, 0
          %v1328 = vsel %vm1284, %v1250, 0
          %v1331 = vsel %vm1284, %v1251, 0
          %1333 = vmatpush.bf16.msra.mxu0 0
          %1334 = vmatpush.bf16.msra.mxu0 0
          %1335 = vmatpush.bf16.msra.mxu0 0
          %1336 = vmatpush.bf16.msra.mxu0 0
          %1337 = vmatpush.bf16.msra.mxu0 %v1279
          %1338 = vmatpush.bf16.msra.mxu0 %v1278
          %1339 = vmatpush.bf16.msra.mxu0 %v1277
          %1340 = vmatpush.bf16.msra.mxu0 %v1276
          %1341 = vmatmul.bf16.gmra.mxu0 %v1286
          %v1342 = vpop.f32.mrf.mxu0
          %v1343 = vadd.f32 0.0, %v1342
          %v1344 = vpop.f32.mrf.mxu0
          %v1345 = vadd.f32 0.0, %v1344
          %1346 = vmatmul.bf16.gmra.mxu0 %v1289
          %v1347 = vpop.f32.mrf.mxu0
          %v1348 = vadd.f32 0.0, %v1347
          %v1349 = vpop.f32.mrf.mxu0
          %v1350 = vadd.f32 0.0, %v1349
          %1351 = vmatmul.bf16.gmra.mxu0 %v1292
          %v1352 = vpop.f32.mrf.mxu0
          %v1353 = vadd.f32 0.0, %v1352
          %v1354 = vpop.f32.mrf.mxu0
          %v1355 = vadd.f32 0.0, %v1354
          %1356 = vmatmul.bf16.gmra.mxu0 %v1295
          %v1357 = vpop.f32.mrf.mxu0
          %v1358 = vadd.f32 0.0, %v1357
          %v1359 = vpop.f32.mrf.mxu0
          %v1360 = vadd.f32 0.0, %v1359
          %1361 = vmatmul.bf16.gmra.mxu0 %v1298
          %v1362 = vpop.f32.mrf.mxu0
          %v1363 = vadd.f32 0.0, %v1362
          %v1364 = vpop.f32.mrf.mxu0
          %v1365 = vadd.f32 0.0, %v1364
          %1366 = vmatmul.bf16.gmra.mxu0 %v1301
          %v1367 = vpop.f32.mrf.mxu0
          %v1368 = vadd.f32 0.0, %v1367
          %v1369 = vpop.f32.mrf.mxu0
          %v1370 = vadd.f32 0.0, %v1369
          %1371 = vmatmul.bf16.gmra.mxu0 %v1304
          %v1372 = vpop.f32.mrf.mxu0
          %v1373 = vadd.f32 0.0, %v1372
          %v1374 = vpop.f32.mrf.mxu0
          %v1375 = vadd.f32 0.0, %v1374
          %1376 = vmatmul.bf16.gmra.mxu0 %v1307
          %v1377 = vpop.f32.mrf.mxu0
          %v1378 = vadd.f32 0.0, %v1377
          %v1379 = vpop.f32.mrf.mxu0
          %v1380 = vadd.f32 0.0, %v1379
          %1381 = vmatmul.bf16.gmra.mxu0 %v1310
          %v1382 = vpop.f32.mrf.mxu0
          %v1383 = vadd.f32 0.0, %v1382
          %v1384 = vpop.f32.mrf.mxu0
          %v1385 = vadd.f32 0.0, %v1384
          %1386 = vmatmul.bf16.gmra.mxu0 %v1313
          %v1387 = vpop.f32.mrf.mxu0
          %v1388 = vadd.f32 0.0, %v1387
          %v1389 = vpop.f32.mrf.mxu0
          %v1390 = vadd.f32 0.0, %v1389
          %1391 = vmatmul.bf16.gmra.mxu0 %v1316
          %v1392 = vpop.f32.mrf.mxu0
          %v1393 = vadd.f32 0.0, %v1392
          %v1394 = vpop.f32.mrf.mxu0
          %v1395 = vadd.f32 0.0, %v1394
          %1396 = vmatmul.bf16.gmra.mxu0 %v1319
          %v1397 = vpop.f32.mrf.mxu0
          %v1398 = vadd.f32 0.0, %v1397
          %v1399 = vpop.f32.mrf.mxu0
          %v1400 = vadd.f32 0.0, %v1399
          %1401 = vmatmul.bf16.gmra.mxu0 %v1322
          %v1402 = vpop.f32.mrf.mxu0
          %v1403 = vadd.f32 0.0, %v1402
          %v1404 = vpop.f32.mrf.mxu0
          %v1405 = vadd.f32 0.0, %v1404
          %1406 = vmatmul.bf16.gmra.mxu0 %v1325
          %v1407 = vpop.f32.mrf.mxu0
          %v1408 = vadd.f32 0.0, %v1407
          %v1409 = vpop.f32.mrf.mxu0
          %v1410 = vadd.f32 0.0, %v1409
          %1411 = vmatmul.bf16.gmra.mxu0 %v1328
          %v1412 = vpop.f32.mrf.mxu0
          %v1413 = vadd.f32 0.0, %v1412
          %v1414 = vpop.f32.mrf.mxu0
          %v1415 = vadd.f32 0.0, %v1414
          %1416 = vmatmul.bf16.gmra.mxu0 %v1331
          %v1417 = vpop.f32.mrf.mxu0
          %v1418 = vadd.f32 0.0, %v1417
          %v1419 = vpop.f32.mrf.mxu0
          %v1420 = vadd.f32 0.0, %v1419
          %1421 = vdwg.mxu0
          %v1422 = vld [vmem:[#allocation4] sm:$0x1]
          %v1423 = vsel %vm1284, %v1343, 0.0
          %v1424 = vsel %vm1284, %v1345, 0.0
          %v1425 = vadd.f32 %v1423, %v1424
          %v1426 = vsel %vm1284, %v1348, 0.0
          %v1427 = vadd.f32 %v1425, %v1426
          %v1428 = vsel %vm1284, %v1350, 0.0
          %v1429 = vadd.f32 %v1427, %v1428
          %v1430 = vsel %vm1284, %v1353, 0.0
          %v1431 = vadd.f32 %v1429, %v1430
          %v1432 = vsel %vm1284, %v1355, 0.0
          %v1433 = vadd.f32 %v1431, %v1432
          %v1434 = vsel %vm1284, %v1358, 0.0
          %v1435 = vadd.f32 %v1433, %v1434
          %v1436 = vsel %vm1284, %v1360, 0.0
          %v1437 = vadd.f32 %v1435, %v1436
          %v1438 = vsel %vm1284, %v1363, 0.0
          %v1439 = vadd.f32 %v1437, %v1438
          %v1440 = vsel %vm1284, %v1365, 0.0
          %v1441 = vadd.f32 %v1439, %v1440
          %v1442 = vsel %vm1284, %v1368, 0.0
          %v1443 = vadd.f32 %v1441, %v1442
          %v1444 = vsel %vm1284, %v1370, 0.0
          %v1445 = vadd.f32 %v1443, %v1444
          %v1446 = vsel %vm1284, %v1373, 0.0
          %v1447 = vadd.f32 %v1445, %v1446
          %v1448 = vsel %vm1284, %v1375, 0.0
          %v1449 = vadd.f32 %v1447, %v1448
          %v1450 = vsel %vm1284, %v1378, 0.0
          %v1451 = vadd.f32 %v1449, %v1450
          %v1452 = vsel %vm1284, %v1380, 0.0
          %v1453 = vadd.f32 %v1451, %v1452
          %v1454 = vsel %vm1284, %v1383, 0.0
          %v1455 = vadd.f32 %v1453, %v1454
          %v1456 = vsel %vm1284, %v1385, 0.0
          %v1457 = vadd.f32 %v1455, %v1456
          %v1458 = vsel %vm1284, %v1388, 0.0
          %v1459 = vadd.f32 %v1457, %v1458
          %v1460 = vsel %vm1284, %v1390, 0.0
          %v1461 = vadd.f32 %v1459, %v1460
          %v1462 = vsel %vm1284, %v1393, 0.0
          %v1463 = vadd.f32 %v1461, %v1462
          %v1464 = vsel %vm1284, %v1395, 0.0
          %v1465 = vadd.f32 %v1463, %v1464
          %v1466 = vsel %vm1284, %v1398, 0.0
          %v1467 = vadd.f32 %v1465, %v1466
          %v1468 = vsel %vm1284, %v1400, 0.0
          %v1469 = vadd.f32 %v1467, %v1468
          %v1470 = vsel %vm1284, %v1403, 0.0
          %v1471 = vadd.f32 %v1469, %v1470
          %v1472 = vsel %vm1284, %v1405, 0.0
          %v1473 = vadd.f32 %v1471, %v1472
          %v1474 = vsel %vm1284, %v1408, 0.0
          %v1475 = vadd.f32 %v1473, %v1474
          %v1476 = vsel %vm1284, %v1410, 0.0
          %v1477 = vadd.f32 %v1475, %v1476
          %v1478 = vsel %vm1284, %v1413, 0.0
          %v1479 = vadd.f32 %v1477, %v1478
          %v1480 = vsel %vm1284, %v1415, 0.0
          %v1481 = vadd.f32 %v1479, %v1480
          %v1482 = vsel %vm1284, %v1418, 0.0
          %v1483 = vadd.f32 %v1481, %v1482
          %v1484 = vsel %vm1284, %v1420, 0.0
          %v1485 = vadd.f32 %v1483, %v1484
          %v1486 = vrot.slane %v1485, 4
          %v1487 = vadd.f32 %v1485, %v1486
          %v1488 = vrot.slane %v1487, 2
          %v1489 = vadd.f32 %v1487, %v1488
          %v1490 = vrot.slane %v1489, 1
          %v1491 = vadd.f32 %v1489, %v1490
          %v1492 = vadd.f32 %v1422, %v1491
          %vm1493 = vcmask 516096
          %1494 = vst.msk [vmem:[#allocation4] sm:$0x1] %vm1493, %v1492
          %v1495 = vld [vmem:[#allocation5] sm:$0x1]
          %v1496 = vmul.f32 %v1343, %v1343
          %v1497 = vmul.f32 %v1345, %v1345
          %v1498 = vmul.f32 %v1348, %v1348
          %v1499 = vmul.f32 %v1350, %v1350
          %v1500 = vmul.f32 %v1353, %v1353
          %v1501 = vmul.f32 %v1355, %v1355
          %v1502 = vmul.f32 %v1358, %v1358
          %v1503 = vmul.f32 %v1360, %v1360
          %v1504 = vmul.f32 %v1363, %v1363
          %v1505 = vmul.f32 %v1365, %v1365
          %v1506 = vmul.f32 %v1368, %v1368
          %v1507 = vmul.f32 %v1370, %v1370
          %v1508 = vmul.f32 %v1373, %v1373
          %v1509 = vmul.f32 %v1375, %v1375
          %v1510 = vmul.f32 %v1378, %v1378
          %v1511 = vmul.f32 %v1380, %v1380
          %v1512 = vmul.f32 %v1383, %v1383
          %v1513 = vmul.f32 %v1385, %v1385
          %v1514 = vmul.f32 %v1388, %v1388
          %v1515 = vmul.f32 %v1390, %v1390
          %v1516 = vmul.f32 %v1393, %v1393
          %v1517 = vmul.f32 %v1395, %v1395
          %v1518 = vmul.f32 %v1398, %v1398
          %v1519 = vmul.f32 %v1400, %v1400
          %v1520 = vmul.f32 %v1403, %v1403
          %v1521 = vmul.f32 %v1405, %v1405
          %v1522 = vmul.f32 %v1408, %v1408
          %v1523 = vmul.f32 %v1410, %v1410
          %v1524 = vmul.f32 %v1413, %v1413
          %v1525 = vmul.f32 %v1415, %v1415
          %v1526 = vmul.f32 %v1418, %v1418
          %v1527 = vmul.f32 %v1420, %v1420
          %v1528 = vsel %vm1284, %v1496, 0.0
          %v1529 = vsel %vm1284, %v1497, 0.0
          %v1530 = vadd.f32 %v1528, %v1529
          %v1531 = vsel %vm1284, %v1498, 0.0
          %v1532 = vadd.f32 %v1530, %v1531
          %v1533 = vsel %vm1284, %v1499, 0.0
          %v1534 = vadd.f32 %v1532, %v1533
          %v1535 = vsel %vm1284, %v1500, 0.0
          %v1536 = vadd.f32 %v1534, %v1535
          %v1537 = vsel %vm1284, %v1501, 0.0
          %v1538 = vadd.f32 %v1536, %v1537
          %v1539 = vsel %vm1284, %v1502, 0.0
          %v1540 = vadd.f32 %v1538, %v1539
          %v1541 = vsel %vm1284, %v1503, 0.0
          %v1542 = vadd.f32 %v1540, %v1541
          %v1543 = vsel %vm1284, %v1504, 0.0
          %v1544 = vadd.f32 %v1542, %v1543
          %v1545 = vsel %vm1284, %v1505, 0.0
          %v1546 = vadd.f32 %v1544, %v1545
          %v1547 = vsel %vm1284, %v1506, 0.0
          %v1548 = vadd.f32 %v1546, %v1547
          %v1549 = vsel %vm1284, %v1507, 0.0
          %v1550 = vadd.f32 %v1548, %v1549
          %v1551 = vsel %vm1284, %v1508, 0.0
          %v1552 = vadd.f32 %v1550, %v1551
          %v1553 = vsel %vm1284, %v1509, 0.0
          %v1554 = vadd.f32 %v1552, %v1553
          %v1555 = vsel %vm1284, %v1510, 0.0
          %v1556 = vadd.f32 %v1554, %v1555
          %v1557 = vsel %vm1284, %v1511, 0.0
          %v1558 = vadd.f32 %v1556, %v1557
          %v1559 = vsel %vm1284, %v1512, 0.0
          %v1560 = vadd.f32 %v1558, %v1559
          %v1561 = vsel %vm1284, %v1513, 0.0
          %v1562 = vadd.f32 %v1560, %v1561
          %v1563 = vsel %vm1284, %v1514, 0.0
          %v1564 = vadd.f32 %v1562, %v1563
          %v1565 = vsel %vm1284, %v1515, 0.0
          %v1566 = vadd.f32 %v1564, %v1565
          %v1567 = vsel %vm1284, %v1516, 0.0
          %v1568 = vadd.f32 %v1566, %v1567
          %v1569 = vsel %vm1284, %v1517, 0.0
          %v1570 = vadd.f32 %v1568, %v1569
          %v1571 = vsel %vm1284, %v1518, 0.0
          %v1572 = vadd.f32 %v1570, %v1571
          %v1573 = vsel %vm1284, %v1519, 0.0
          %v1574 = vadd.f32 %v1572, %v1573
          %v1575 = vsel %vm1284, %v1520, 0.0
          %v1576 = vadd.f32 %v1574, %v1575
          %v1577 = vsel %vm1284, %v1521, 0.0
          %v1578 = vadd.f32 %v1576, %v1577
          %v1579 = vsel %vm1284, %v1522, 0.0
          %v1580 = vadd.f32 %v1578, %v1579
          %v1581 = vsel %vm1284, %v1523, 0.0
          %v1582 = vadd.f32 %v1580, %v1581
          %v1583 = vsel %vm1284, %v1524, 0.0
          %v1584 = vadd.f32 %v1582, %v1583
          %v1585 = vsel %vm1284, %v1525, 0.0
          %v1586 = vadd.f32 %v1584, %v1585
          %v1587 = vsel %vm1284, %v1526, 0.0
          %v1588 = vadd.f32 %v1586, %v1587
          %v1589 = vsel %vm1284, %v1527, 0.0
          %v1590 = vadd.f32 %v1588, %v1589
          %v1591 = vrot.slane %v1590, 4
          %v1592 = vadd.f32 %v1590, %v1591
          %v1593 = vrot.slane %v1592, 2
          %v1594 = vadd.f32 %v1592, %v1593
          %v1595 = vrot.slane %v1594, 1
          %v1596 = vadd.f32 %v1594, %v1595
          %v1597 = vadd.f32 %v1495, %v1596
          %1598 = vst.msk [vmem:[#allocation5] sm:$0x1] %vm1493, %v1597
        $region76: #{tpu_custom_call.1} parent=63 // pred_fallthru
          _
        %p1599 = scmp.eq.s32.totalorder %s28, 2
        // Predicated region
        $region81: #{tpu_custom_call.1} parent=63 // pred_check
          %p1600 = pneg %p1599
        $region82: #{tpu_custom_call.1} parent=63 // pred_check_branch
          %1602 = sbr.rel (%p1600) target = $region84
        $region83: #{tpu_custom_call.1} parent=63 // pred_region
          // Predicated region
          $region85: #{tpu_custom_call.1} parent=83 // pred_check
            _
          $region86: #{tpu_custom_call.1} parent=83 // pred_check_branch
            %1604 = sbr.rel (%p411) target = $region88
          $region87: #{tpu_custom_call.1} parent=83 // pred_region
            %vm1605 = vcmask 516096
            %1606 = vst.msk [vmem:[#allocation6] sm:$0x1] %vm1605, 0.0
            %1607 = vst.msk [vmem:[#allocation7] sm:$0x1] %vm1605, 0.0
            %vm1608 = vcmask 517120
            %1609 = vst.msk [vmem:[#allocation8] sm:$0x3] %vm1608, 0.0
          $region88: #{tpu_custom_call.1} parent=83 // pred_fallthru
            _
          %v1610 = vld [vmem:[#allocation2] sm:$0x1]
          %v1611 = vmul.f32 %v1610, 0.001953125
          %v1612 = vld [vmem:[#allocation3] sm:$0x1]
          %v1613 = vmul.f32 %v1612, 0.001953125
          %v1614 = vmul.f32 %v1611, %v1611
          %v1615 = vsub.f32 %v1613, %v1614
          %v1616 = vadd.f32 %v1615, 1e-05
          %v1617 = vrsqrt.pop %v1616
          %v1618 = vmul.f32 %v1617, %v1616
          %v1619 = vmul.f32 %v1618, %v1617
          %v1620 = vmul.f32 0.5, %v1619
          %v1621 = vsub.f32 1.5, %v1620
          %v1622 = vmul.f32 %v1617, %v1621
          %vm1623 = vweird.f32 %v1616
          %vm1624 = vweird.f32 %v1617
          %vm1625 = vmor %vm1623, %vm1624
          %v1626 = vsel %vm1625, %v1617, %v1622
          %v1627 = vld [vmem:[%s2] sm:$0x1]
          %v1628 = vmul.f32 %v1627, %v1626
          %v1629 = vld [vmem:[%s3] sm:$0x1]
          %v1630 = vmul.f32 %v1611, %v1628
          %v1631 = vsub.f32 %v1629, %v1630
          %v1632 = vld [vmem:[#allocation4] sm:$0x1]
          %v1633 = vmul.f32 %v1632, 0.001953125
          %v1634 = vld [vmem:[#allocation5] sm:$0x1]
          %v1635 = vmul.f32 %v1634, 0.001953125
          %v1636 = vmul.f32 %v1633, %v1633
          %v1637 = vsub.f32 %v1635, %v1636
          %v1638 = vadd.f32 %v1637, 1e-05
          %v1639 = vrsqrt.pop %v1638
          %v1640 = vmul.f32 %v1639, %v1638
          %v1641 = vmul.f32 %v1640, %v1639
          %v1642 = vmul.f32 0.5, %v1641
          %v1643 = vsub.f32 1.5, %v1642
          %v1644 = vmul.f32 %v1639, %v1643
          %vm1645 = vweird.f32 %v1638
          %vm1646 = vweird.f32 %v1639
          %vm1647 = vmor %vm1645, %vm1646
          %v1648 = vsel %vm1647, %v1639, %v1644
          %v1649 = vld [vmem:[%s5] sm:$0x1]
          %v1650 = vmul.f32 %v1649, %v1648
          %v1651 = vld [vmem:[%s6] sm:$0x1]
          %v1652 = vmul.f32 %v1633, %v1650
          %v1653 = vsub.f32 %v1651, %v1652
          %v1654 = vld [vmem:[%s1] sm:$0xf]
          %v1655 = vld [vmem:[%s1 + $0x4] sm:$0xf]
          %v1656 = vld [vmem:[%s1 + $0x8] sm:$0xf]
          %v1657 = vld [vmem:[%s1 + $0xc] sm:$0xf]
          %v1690 = vunpack.c.l.b16 %v416
          %v1691 = vunpack.c.l.b16 %v417
          %v1692 = vunpack.c.l.b16 %v418
          %v1693 = vunpack.c.l.b16 %v419
          %v1694 = vunpack.c.l.b16 %v420
          %v1695 = vunpack.c.l.b16 %v421
          %v1696 = vunpack.c.l.b16 %v422
          %v1697 = vunpack.c.l.b16 %v423
          %v1698 = vunpack.c.l.b16 %v424
          %v1699 = vunpack.c.l.b16 %v425
          %v1700 = vunpack.c.l.b16 %v426
          %v1701 = vunpack.c.l.b16 %v427
          %v1702 = vunpack.c.l.b16 %v428
          %v1703 = vunpack.c.l.b16 %v429
          %v1704 = vunpack.c.l.b16 %v430
          %v1705 = vunpack.c.l.b16 %v431
          %v1706 = vunpack.c.l.b16 %v432
          %v1707 = vunpack.c.l.b16 %v433
          %v1708 = vunpack.c.l.b16 %v434
          %v1709 = vunpack.c.l.b16 %v435
          %v1710 = vunpack.c.l.b16 %v436
          %v1711 = vunpack.c.l.b16 %v437
          %v1712 = vunpack.c.l.b16 %v438
          %v1713 = vunpack.c.l.b16 %v439
          %v1714 = vunpack.c.l.b16 %v440
          %v1715 = vunpack.c.l.b16 %v441
          %v1716 = vunpack.c.l.b16 %v442
          %v1717 = vunpack.c.l.b16 %v443
          %v1718 = vunpack.c.l.b16 %v444
          %v1719 = vunpack.c.l.b16 %v445
          %v1720 = vunpack.c.l.b16 %v446
          %v1721 = vunpack.c.l.b16 %v447
          %v1722 = vpack.c.b16 %v1691, %v1690
          %v1723 = vpack.c.b16 %v1693, %v1692
          %v1724 = vpack.c.b16 %v1695, %v1694
          %v1725 = vpack.c.b16 %v1697, %v1696
          %v1726 = vpack.c.b16 %v1699, %v1698
          %v1727 = vpack.c.b16 %v1701, %v1700
          %v1728 = vpack.c.b16 %v1703, %v1702
          %v1729 = vpack.c.b16 %v1705, %v1704
          %v1730 = vpack.c.b16 %v1707, %v1706
          %v1731 = vpack.c.b16 %v1709, %v1708
          %v1732 = vpack.c.b16 %v1711, %v1710
          %v1733 = vpack.c.b16 %v1713, %v1712
          %v1734 = vpack.c.b16 %v1715, %v1714
          %v1735 = vpack.c.b16 %v1717, %v1716
          %v1736 = vpack.c.b16 %v1719, %v1718
          %v1737 = vpack.c.b16 %v1721, %v1720
          %v1742 = vunpack.c.l.b16 %v1654
          %v1743 = vunpack.c.l.b16 %v1655
          %v1744 = vunpack.c.l.b16 %v1656
          %v1745 = vunpack.c.l.b16 %v1657
          %v1746 = vpack.c.b16 %v1743, %v1742
          %v1747 = vpack.c.b16 %v1745, %v1744
          %vm1750 = vcmask 261120
          %v1752 = vsel %vm1750, %v1722, 0
          %v1755 = vsel %vm1750, %v1723, 0
          %v1758 = vsel %vm1750, %v1724, 0
          %v1761 = vsel %vm1750, %v1725, 0
          %v1764 = vsel %vm1750, %v1726, 0
          %v1767 = vsel %vm1750, %v1727, 0
          %v1770 = vsel %vm1750, %v1728, 0
          %v1773 = vsel %vm1750, %v1729, 0
          %v1776 = vsel %vm1750, %v1730, 0
          %v1779 = vsel %vm1750, %v1731, 0
          %v1782 = vsel %vm1750, %v1732, 0
          %v1785 = vsel %vm1750, %v1733, 0
          %v1788 = vsel %vm1750, %v1734, 0
          %v1791 = vsel %vm1750, %v1735, 0
          %v1794 = vsel %vm1750, %v1736, 0
          %v1797 = vsel %vm1750, %v1737, 0
          %1799 = vmatpush.bf16.msra.mxu0 0
          %1800 = vmatpush.bf16.msra.mxu0 0
          %1801 = vmatpush.bf16.msra.mxu0 0
          %1802 = vmatpush.bf16.msra.mxu0 0
          %1803 = vmatpush.bf16.msra.mxu0 0
          %1804 = vmatpush.bf16.msra.mxu0 0
          %1805 = vmatpush.bf16.msra.mxu0 %v1747
          %1806 = vmatpush.bf16.msra.mxu0 %v1746
          %1807 = vmatmul.bf16.gmra.mxu0 %v1752
          %v1808 = vpop.f32.mrf.mxu0
          %v1809 = vadd.f32 0.0, %v1808
          %v1810 = vpop.f32.mrf.mxu0
          %v1811 = vadd.f32 0.0, %v1810
          %1812 = vmatmul.bf16.gmra.mxu0 %v1755
          %v1813 = vpop.f32.mrf.mxu0
          %v1814 = vadd.f32 0.0, %v1813
          %v1815 = vpop.f32.mrf.mxu0
          %v1816 = vadd.f32 0.0, %v1815
          %1817 = vmatmul.bf16.gmra.mxu0 %v1758
          %v1818 = vpop.f32.mrf.mxu0
          %v1819 = vadd.f32 0.0, %v1818
          %v1820 = vpop.f32.mrf.mxu0
          %v1821 = vadd.f32 0.0, %v1820
          %1822 = vmatmul.bf16.gmra.mxu0 %v1761
          %v1823 = vpop.f32.mrf.mxu0
          %v1824 = vadd.f32 0.0, %v1823
          %v1825 = vpop.f32.mrf.mxu0
          %v1826 = vadd.f32 0.0, %v1825
          %1827 = vmatmul.bf16.gmra.mxu0 %v1764
          %v1828 = vpop.f32.mrf.mxu0
          %v1829 = vadd.f32 0.0, %v1828
          %v1830 = vpop.f32.mrf.mxu0
          %v1831 = vadd.f32 0.0, %v1830
          %1832 = vmatmul.bf16.gmra.mxu0 %v1767
          %v1833 = vpop.f32.mrf.mxu0
          %v1834 = vadd.f32 0.0, %v1833
          %v1835 = vpop.f32.mrf.mxu0
          %v1836 = vadd.f32 0.0, %v1835
          %1837 = vmatmul.bf16.gmra.mxu0 %v1770
          %v1838 = vpop.f32.mrf.mxu0
          %v1839 = vadd.f32 0.0, %v1838
          %v1840 = vpop.f32.mrf.mxu0
          %v1841 = vadd.f32 0.0, %v1840
          %1842 = vmatmul.bf16.gmra.mxu0 %v1773
          %v1843 = vpop.f32.mrf.mxu0
          %v1844 = vadd.f32 0.0, %v1843
          %v1845 = vpop.f32.mrf.mxu0
          %v1846 = vadd.f32 0.0, %v1845
          %1847 = vmatmul.bf16.gmra.mxu0 %v1776
          %v1848 = vpop.f32.mrf.mxu0
          %v1849 = vadd.f32 0.0, %v1848
          %v1850 = vpop.f32.mrf.mxu0
          %v1851 = vadd.f32 0.0, %v1850
          %1852 = vmatmul.bf16.gmra.mxu0 %v1779
          %v1853 = vpop.f32.mrf.mxu0
          %v1854 = vadd.f32 0.0, %v1853
          %v1855 = vpop.f32.mrf.mxu0
          %v1856 = vadd.f32 0.0, %v1855
          %1857 = vmatmul.bf16.gmra.mxu0 %v1782
          %v1858 = vpop.f32.mrf.mxu0
          %v1859 = vadd.f32 0.0, %v1858
          %v1860 = vpop.f32.mrf.mxu0
          %v1861 = vadd.f32 0.0, %v1860
          %1862 = vmatmul.bf16.gmra.mxu0 %v1785
          %v1863 = vpop.f32.mrf.mxu0
          %v1864 = vadd.f32 0.0, %v1863
          %v1865 = vpop.f32.mrf.mxu0
          %v1866 = vadd.f32 0.0, %v1865
          %1867 = vmatmul.bf16.gmra.mxu0 %v1788
          %v1868 = vpop.f32.mrf.mxu0
          %v1869 = vadd.f32 0.0, %v1868
          %v1870 = vpop.f32.mrf.mxu0
          %v1871 = vadd.f32 0.0, %v1870
          %1872 = vmatmul.bf16.gmra.mxu0 %v1791
          %v1873 = vpop.f32.mrf.mxu0
          %v1874 = vadd.f32 0.0, %v1873
          %v1875 = vpop.f32.mrf.mxu0
          %v1876 = vadd.f32 0.0, %v1875
          %1877 = vmatmul.bf16.gmra.mxu0 %v1794
          %v1878 = vpop.f32.mrf.mxu0
          %v1879 = vadd.f32 0.0, %v1878
          %v1880 = vpop.f32.mrf.mxu0
          %v1881 = vadd.f32 0.0, %v1880
          %1882 = vmatmul.bf16.gmra.mxu0 %v1797
          %v1883 = vpop.f32.mrf.mxu0
          %v1884 = vadd.f32 0.0, %v1883
          %v1885 = vpop.f32.mrf.mxu0
          %v1886 = vadd.f32 0.0, %v1885
          %1887 = vdwg.mxu0
          %v1889 = vperm.slane %v1628, 0
          %v1891 = vmul.f32 %v1809, %v1889
          %v1892 = vmul.f32 %v1811, %v1889
          %v1893 = vmul.f32 %v1814, %v1889
          %v1894 = vmul.f32 %v1816, %v1889
          %v1895 = vmul.f32 %v1819, %v1889
          %v1896 = vmul.f32 %v1821, %v1889
          %v1897 = vmul.f32 %v1824, %v1889
          %v1898 = vmul.f32 %v1826, %v1889
          %v1899 = vmul.f32 %v1829, %v1889
          %v1900 = vmul.f32 %v1831, %v1889
          %v1901 = vmul.f32 %v1834, %v1889
          %v1902 = vmul.f32 %v1836, %v1889
          %v1903 = vmul.f32 %v1839, %v1889
          %v1904 = vmul.f32 %v1841, %v1889
          %v1905 = vmul.f32 %v1844, %v1889
          %v1906 = vmul.f32 %v1846, %v1889
          %v1907 = vmul.f32 %v1849, %v1889
          %v1908 = vmul.f32 %v1851, %v1889
          %v1909 = vmul.f32 %v1854, %v1889
          %v1910 = vmul.f32 %v1856, %v1889
          %v1911 = vmul.f32 %v1859, %v1889
          %v1912 = vmul.f32 %v1861, %v1889
          %v1913 = vmul.f32 %v1864, %v1889
          %v1914 = vmul.f32 %v1866, %v1889
          %v1915 = vmul.f32 %v1869, %v1889
          %v1916 = vmul.f32 %v1871, %v1889
          %v1917 = vmul.f32 %v1874, %v1889
          %v1918 = vmul.f32 %v1876, %v1889
          %v1919 = vmul.f32 %v1879, %v1889
          %v1920 = vmul.f32 %v1881, %v1889
          %v1921 = vmul.f32 %v1884, %v1889
          %v1922 = vmul.f32 %v1886, %v1889
          %v1924 = vperm.slane %v1631, 0
          %v1926 = vadd.f32 %v1891, %v1924
          %v1927 = vadd.f32 %v1892, %v1924
          %v1928 = vadd.f32 %v1893, %v1924
          %v1929 = vadd.f32 %v1894, %v1924
          %v1930 = vadd.f32 %v1895, %v1924
          %v1931 = vadd.f32 %v1896, %v1924
          %v1932 = vadd.f32 %v1897, %v1924
          %v1933 = vadd.f32 %v1898, %v1924
          %v1934 = vadd.f32 %v1899, %v1924
          %v1935 = vadd.f32 %v1900, %v1924
          %v1936 = vadd.f32 %v1901, %v1924
          %v1937 = vadd.f32 %v1902, %v1924
          %v1938 = vadd.f32 %v1903, %v1924
          %v1939 = vadd.f32 %v1904, %v1924
          %v1940 = vadd.f32 %v1905, %v1924
          %v1941 = vadd.f32 %v1906, %v1924
          %v1942 = vadd.f32 %v1907, %v1924
          %v1943 = vadd.f32 %v1908, %v1924
          %v1944 = vadd.f32 %v1909, %v1924
          %v1945 = vadd.f32 %v1910, %v1924
          %v1946 = vadd.f32 %v1911, %v1924
          %v1947 = vadd.f32 %v1912, %v1924
          %v1948 = vadd.f32 %v1913, %v1924
          %v1949 = vadd.f32 %v1914, %v1924
          %v1950 = vadd.f32 %v1915, %v1924
          %v1951 = vadd.f32 %v1916, %v1924
          %v1952 = vadd.f32 %v1917, %v1924
          %v1953 = vadd.f32 %v1918, %v1924
          %v1954 = vadd.f32 %v1919, %v1924
          %v1955 = vadd.f32 %v1920, %v1924
          %v1956 = vadd.f32 %v1921, %v1924
          %v1957 = vadd.f32 %v1922, %v1924
          %v1958 = vmax.f32 %v1926, 0.0
          %v1959 = vmax.f32 %v1927, 0.0
          %v1960 = vmax.f32 %v1928, 0.0
          %v1961 = vmax.f32 %v1929, 0.0
          %v1962 = vmax.f32 %v1930, 0.0
          %v1963 = vmax.f32 %v1931, 0.0
          %v1964 = vmax.f32 %v1932, 0.0
          %v1965 = vmax.f32 %v1933, 0.0
          %v1966 = vmax.f32 %v1934, 0.0
          %v1967 = vmax.f32 %v1935, 0.0
          %v1968 = vmax.f32 %v1936, 0.0
          %v1969 = vmax.f32 %v1937, 0.0
          %v1970 = vmax.f32 %v1938, 0.0
          %v1971 = vmax.f32 %v1939, 0.0
          %v1972 = vmax.f32 %v1940, 0.0
          %v1973 = vmax.f32 %v1941, 0.0
          %v1974 = vmax.f32 %v1942, 0.0
          %v1975 = vmax.f32 %v1943, 0.0
          %v1976 = vmax.f32 %v1944, 0.0
          %v1977 = vmax.f32 %v1945, 0.0
          %v1978 = vmax.f32 %v1946, 0.0
          %v1979 = vmax.f32 %v1947, 0.0
          %v1980 = vmax.f32 %v1948, 0.0
          %v1981 = vmax.f32 %v1949, 0.0
          %v1982 = vmax.f32 %v1950, 0.0
          %v1983 = vmax.f32 %v1951, 0.0
          %v1984 = vmax.f32 %v1952, 0.0
          %v1985 = vmax.f32 %v1953, 0.0
          %v1986 = vmax.f32 %v1954, 0.0
          %v1987 = vmax.f32 %v1955, 0.0
          %v1988 = vmax.f32 %v1956, 0.0
          %v1989 = vmax.f32 %v1957, 0.0
          %v1990 = vpack.c.bf16 %v1959, %v1958
          %v1991 = vpack.c.bf16 %v1961, %v1960
          %v1992 = vpack.c.bf16 %v1963, %v1962
          %v1993 = vpack.c.bf16 %v1965, %v1964
          %v1994 = vpack.c.bf16 %v1967, %v1966
          %v1995 = vpack.c.bf16 %v1969, %v1968
          %v1996 = vpack.c.bf16 %v1971, %v1970
          %v1997 = vpack.c.bf16 %v1973, %v1972
          %v1998 = vpack.c.bf16 %v1975, %v1974
          %v1999 = vpack.c.bf16 %v1977, %v1976
          %v2000 = vpack.c.bf16 %v1979, %v1978
          %v2001 = vpack.c.bf16 %v1981, %v1980
          %v2002 = vpack.c.bf16 %v1983, %v1982
          %v2003 = vpack.c.bf16 %v1985, %v1984
          %v2004 = vpack.c.bf16 %v1987, %v1986
          %v2005 = vpack.c.bf16 %v1989, %v1988
          %v2006 = vld [vmem:[%s4] sm:$0xf]
          %v2007 = vld [vmem:[%s4 + $0x4] sm:$0xf]
          %v2008 = vld [vmem:[%s4 + $0x8] sm:$0xf]
          %v2009 = vld [vmem:[%s4 + $0xc] sm:$0xf]
          %v2010 = vld [vmem:[%s4 + $0x10] sm:$0xf]
          %v2011 = vld [vmem:[%s4 + $0x14] sm:$0xf]
          %v2012 = vld [vmem:[%s4 + $0x18] sm:$0xf]
          %v2013 = vld [vmem:[%s4 + $0x1c] sm:$0xf]
          %v2022 = vunpack.c.l.b16 %v2006
          %v2023 = vunpack.c.l.b16 %v2007
          %v2024 = vunpack.c.l.b16 %v2008
          %v2025 = vunpack.c.l.b16 %v2009
          %v2026 = vunpack.c.l.b16 %v2010
          %v2027 = vunpack.c.l.b16 %v2011
          %v2028 = vunpack.c.l.b16 %v2012
          %v2029 = vunpack.c.l.b16 %v2013
          %v2030 = vpack.c.b16 %v2023, %v2022
          %v2031 = vpack.c.b16 %v2025, %v2024
          %v2032 = vpack.c.b16 %v2027, %v2026
          %v2033 = vpack.c.b16 %v2029, %v2028
          %vm2038 = vcmask 523264
          %v2040 = vsel %vm2038, %v1990, 0
          %v2043 = vsel %vm2038, %v1991, 0
          %v2046 = vsel %vm2038, %v1992, 0
          %v2049 = vsel %vm2038, %v1993, 0
          %v2052 = vsel %vm2038, %v1994, 0
          %v2055 = vsel %vm2038, %v1995, 0
          %v2058 = vsel %vm2038, %v1996, 0
          %v2061 = vsel %vm2038, %v1997, 0
          %v2064 = vsel %vm2038, %v1998, 0
          %v2067 = vsel %vm2038, %v1999, 0
          %v2070 = vsel %vm2038, %v2000, 0
          %v2073 = vsel %vm2038, %v2001, 0
          %v2076 = vsel %vm2038, %v2002, 0
          %v2079 = vsel %vm2038, %v2003, 0
          %v2082 = vsel %vm2038, %v2004, 0
          %v2085 = vsel %vm2038, %v2005, 0
          %2087 = vmatpush.bf16.msra.mxu0 0
          %2088 = vmatpush.bf16.msra.mxu0 0
          %2089 = vmatpush.bf16.msra.mxu0 0
          %2090 = vmatpush.bf16.msra.mxu0 0
          %2091 = vmatpush.bf16.msra.mxu0 %v2033
          %2092 = vmatpush.bf16.msra.mxu0 %v2032
          %2093 = vmatpush.bf16.msra.mxu0 %v2031
          %2094 = vmatpush.bf16.msra.mxu0 %v2030
          %2095 = vmatmul.bf16.gmra.mxu0 %v2040
          %v2096 = vpop.f32.mrf.mxu0
          %v2097 = vadd.f32 0.0, %v2096
          %v2098 = vpop.f32.mrf.mxu0
          %v2099 = vadd.f32 0.0, %v2098
          %2100 = vmatmul.bf16.gmra.mxu0 %v2043
          %v2101 = vpop.f32.mrf.mxu0
          %v2102 = vadd.f32 0.0, %v2101
          %v2103 = vpop.f32.mrf.mxu0
          %v2104 = vadd.f32 0.0, %v2103
          %2105 = vmatmul.bf16.gmra.mxu0 %v2046
          %v2106 = vpop.f32.mrf.mxu0
          %v2107 = vadd.f32 0.0, %v2106
          %v2108 = vpop.f32.mrf.mxu0
          %v2109 = vadd.f32 0.0, %v2108
          %2110 = vmatmul.bf16.gmra.mxu0 %v2049
          %v2111 = vpop.f32.mrf.mxu0
          %v2112 = vadd.f32 0.0, %v2111
          %v2113 = vpop.f32.mrf.mxu0
          %v2114 = vadd.f32 0.0, %v2113
          %2115 = vmatmul.bf16.gmra.mxu0 %v2052
          %v2116 = vpop.f32.mrf.mxu0
          %v2117 = vadd.f32 0.0, %v2116
          %v2118 = vpop.f32.mrf.mxu0
          %v2119 = vadd.f32 0.0, %v2118
          %2120 = vmatmul.bf16.gmra.mxu0 %v2055
          %v2121 = vpop.f32.mrf.mxu0
          %v2122 = vadd.f32 0.0, %v2121
          %v2123 = vpop.f32.mrf.mxu0
          %v2124 = vadd.f32 0.0, %v2123
          %2125 = vmatmul.bf16.gmra.mxu0 %v2058
          %v2126 = vpop.f32.mrf.mxu0
          %v2127 = vadd.f32 0.0, %v2126
          %v2128 = vpop.f32.mrf.mxu0
          %v2129 = vadd.f32 0.0, %v2128
          %2130 = vmatmul.bf16.gmra.mxu0 %v2061
          %v2131 = vpop.f32.mrf.mxu0
          %v2132 = vadd.f32 0.0, %v2131
          %v2133 = vpop.f32.mrf.mxu0
          %v2134 = vadd.f32 0.0, %v2133
          %2135 = vmatmul.bf16.gmra.mxu0 %v2064
          %v2136 = vpop.f32.mrf.mxu0
          %v2137 = vadd.f32 0.0, %v2136
          %v2138 = vpop.f32.mrf.mxu0
          %v2139 = vadd.f32 0.0, %v2138
          %2140 = vmatmul.bf16.gmra.mxu0 %v2067
          %v2141 = vpop.f32.mrf.mxu0
          %v2142 = vadd.f32 0.0, %v2141
          %v2143 = vpop.f32.mrf.mxu0
          %v2144 = vadd.f32 0.0, %v2143
          %2145 = vmatmul.bf16.gmra.mxu0 %v2070
          %v2146 = vpop.f32.mrf.mxu0
          %v2147 = vadd.f32 0.0, %v2146
          %v2148 = vpop.f32.mrf.mxu0
          %v2149 = vadd.f32 0.0, %v2148
          %2150 = vmatmul.bf16.gmra.mxu0 %v2073
          %v2151 = vpop.f32.mrf.mxu0
          %v2152 = vadd.f32 0.0, %v2151
          %v2153 = vpop.f32.mrf.mxu0
          %v2154 = vadd.f32 0.0, %v2153
          %2155 = vmatmul.bf16.gmra.mxu0 %v2076
          %v2156 = vpop.f32.mrf.mxu0
          %v2157 = vadd.f32 0.0, %v2156
          %v2158 = vpop.f32.mrf.mxu0
          %v2159 = vadd.f32 0.0, %v2158
          %2160 = vmatmul.bf16.gmra.mxu0 %v2079
          %v2161 = vpop.f32.mrf.mxu0
          %v2162 = vadd.f32 0.0, %v2161
          %v2163 = vpop.f32.mrf.mxu0
          %v2164 = vadd.f32 0.0, %v2163
          %2165 = vmatmul.bf16.gmra.mxu0 %v2082
          %v2166 = vpop.f32.mrf.mxu0
          %v2167 = vadd.f32 0.0, %v2166
          %v2168 = vpop.f32.mrf.mxu0
          %v2169 = vadd.f32 0.0, %v2168
          %2170 = vmatmul.bf16.gmra.mxu0 %v2085
          %v2171 = vpop.f32.mrf.mxu0
          %v2172 = vadd.f32 0.0, %v2171
          %v2173 = vpop.f32.mrf.mxu0
          %v2174 = vadd.f32 0.0, %v2173
          %2175 = vdwg.mxu0
          %v2177 = vperm.slane %v1650, 0
          %v2179 = vmul.f32 %v2097, %v2177
          %v2180 = vmul.f32 %v2099, %v2177
          %v2181 = vmul.f32 %v2102, %v2177
          %v2182 = vmul.f32 %v2104, %v2177
          %v2183 = vmul.f32 %v2107, %v2177
          %v2184 = vmul.f32 %v2109, %v2177
          %v2185 = vmul.f32 %v2112, %v2177
          %v2186 = vmul.f32 %v2114, %v2177
          %v2187 = vmul.f32 %v2117, %v2177
          %v2188 = vmul.f32 %v2119, %v2177
          %v2189 = vmul.f32 %v2122, %v2177
          %v2190 = vmul.f32 %v2124, %v2177
          %v2191 = vmul.f32 %v2127, %v2177
          %v2192 = vmul.f32 %v2129, %v2177
          %v2193 = vmul.f32 %v2132, %v2177
          %v2194 = vmul.f32 %v2134, %v2177
          %v2195 = vmul.f32 %v2137, %v2177
          %v2196 = vmul.f32 %v2139, %v2177
          %v2197 = vmul.f32 %v2142, %v2177
          %v2198 = vmul.f32 %v2144, %v2177
          %v2199 = vmul.f32 %v2147, %v2177
          %v2200 = vmul.f32 %v2149, %v2177
          %v2201 = vmul.f32 %v2152, %v2177
          %v2202 = vmul.f32 %v2154, %v2177
          %v2203 = vmul.f32 %v2157, %v2177
          %v2204 = vmul.f32 %v2159, %v2177
          %v2205 = vmul.f32 %v2162, %v2177
          %v2206 = vmul.f32 %v2164, %v2177
          %v2207 = vmul.f32 %v2167, %v2177
          %v2208 = vmul.f32 %v2169, %v2177
          %v2209 = vmul.f32 %v2172, %v2177
          %v2210 = vmul.f32 %v2174, %v2177
          %v2212 = vperm.slane %v1653, 0
          %v2214 = vadd.f32 %v2179, %v2212
          %v2215 = vadd.f32 %v2180, %v2212
          %v2216 = vadd.f32 %v2181, %v2212
          %v2217 = vadd.f32 %v2182, %v2212
          %v2218 = vadd.f32 %v2183, %v2212
          %v2219 = vadd.f32 %v2184, %v2212
          %v2220 = vadd.f32 %v2185, %v2212
          %v2221 = vadd.f32 %v2186, %v2212
          %v2222 = vadd.f32 %v2187, %v2212
          %v2223 = vadd.f32 %v2188, %v2212
          %v2224 = vadd.f32 %v2189, %v2212
          %v2225 = vadd.f32 %v2190, %v2212
          %v2226 = vadd.f32 %v2191, %v2212
          %v2227 = vadd.f32 %v2192, %v2212
          %v2228 = vadd.f32 %v2193, %v2212
          %v2229 = vadd.f32 %v2194, %v2212
          %v2230 = vadd.f32 %v2195, %v2212
          %v2231 = vadd.f32 %v2196, %v2212
          %v2232 = vadd.f32 %v2197, %v2212
          %v2233 = vadd.f32 %v2198, %v2212
          %v2234 = vadd.f32 %v2199, %v2212
          %v2235 = vadd.f32 %v2200, %v2212
          %v2236 = vadd.f32 %v2201, %v2212
          %v2237 = vadd.f32 %v2202, %v2212
          %v2238 = vadd.f32 %v2203, %v2212
          %v2239 = vadd.f32 %v2204, %v2212
          %v2240 = vadd.f32 %v2205, %v2212
          %v2241 = vadd.f32 %v2206, %v2212
          %v2242 = vadd.f32 %v2207, %v2212
          %v2243 = vadd.f32 %v2208, %v2212
          %v2244 = vadd.f32 %v2209, %v2212
          %v2245 = vadd.f32 %v2210, %v2212
          %v2246 = vmax.f32 %v2214, 0.0
          %v2247 = vmax.f32 %v2215, 0.0
          %v2248 = vmax.f32 %v2216, 0.0
          %v2249 = vmax.f32 %v2217, 0.0
          %v2250 = vmax.f32 %v2218, 0.0
          %v2251 = vmax.f32 %v2219, 0.0
          %v2252 = vmax.f32 %v2220, 0.0
          %v2253 = vmax.f32 %v2221, 0.0
          %v2254 = vmax.f32 %v2222, 0.0
          %v2255 = vmax.f32 %v2223, 0.0
          %v2256 = vmax.f32 %v2224, 0.0
          %v2257 = vmax.f32 %v2225, 0.0
          %v2258 = vmax.f32 %v2226, 0.0
          %v2259 = vmax.f32 %v2227, 0.0
          %v2260 = vmax.f32 %v2228, 0.0
          %v2261 = vmax.f32 %v2229, 0.0
          %v2262 = vmax.f32 %v2230, 0.0
          %v2263 = vmax.f32 %v2231, 0.0
          %v2264 = vmax.f32 %v2232, 0.0
          %v2265 = vmax.f32 %v2233, 0.0
          %v2266 = vmax.f32 %v2234, 0.0
          %v2267 = vmax.f32 %v2235, 0.0
          %v2268 = vmax.f32 %v2236, 0.0
          %v2269 = vmax.f32 %v2237, 0.0
          %v2270 = vmax.f32 %v2238, 0.0
          %v2271 = vmax.f32 %v2239, 0.0
          %v2272 = vmax.f32 %v2240, 0.0
          %v2273 = vmax.f32 %v2241, 0.0
          %v2274 = vmax.f32 %v2242, 0.0
          %v2275 = vmax.f32 %v2243, 0.0
          %v2276 = vmax.f32 %v2244, 0.0
          %v2277 = vmax.f32 %v2245, 0.0
          %v2278 = vpack.c.bf16 %v2247, %v2246
          %v2279 = vpack.c.bf16 %v2249, %v2248
          %v2280 = vpack.c.bf16 %v2251, %v2250
          %v2281 = vpack.c.bf16 %v2253, %v2252
          %v2282 = vpack.c.bf16 %v2255, %v2254
          %v2283 = vpack.c.bf16 %v2257, %v2256
          %v2284 = vpack.c.bf16 %v2259, %v2258
          %v2285 = vpack.c.bf16 %v2261, %v2260
          %v2286 = vpack.c.bf16 %v2263, %v2262
          %v2287 = vpack.c.bf16 %v2265, %v2264
          %v2288 = vpack.c.bf16 %v2267, %v2266
          %v2289 = vpack.c.bf16 %v2269, %v2268
          %v2290 = vpack.c.bf16 %v2271, %v2270
          %v2291 = vpack.c.bf16 %v2273, %v2272
          %v2292 = vpack.c.bf16 %v2275, %v2274
          %v2293 = vpack.c.bf16 %v2277, %v2276
          %v2294 = vld [vmem:[%s7] sm:$0xf]
          %v2295 = vld [vmem:[%s7 + $0x4] sm:$0xf]
          %v2296 = vld [vmem:[%s7 + $0x8] sm:$0xf]
          %v2297 = vld [vmem:[%s7 + $0xc] sm:$0xf]
          %v2298 = vld [vmem:[%s7 + $0x10] sm:$0xf]
          %v2299 = vld [vmem:[%s7 + $0x14] sm:$0xf]
          %v2300 = vld [vmem:[%s7 + $0x18] sm:$0xf]
          %v2301 = vld [vmem:[%s7 + $0x1c] sm:$0xf]
          %v2310 = vunpack.c.l.b16 %v2294
          %v2311 = vunpack.c.l.b16 %v2295
          %v2312 = vunpack.c.l.b16 %v2296
          %v2313 = vunpack.c.l.b16 %v2297
          %v2314 = vunpack.c.l.b16 %v2298
          %v2315 = vunpack.c.l.b16 %v2299
          %v2316 = vunpack.c.l.b16 %v2300
          %v2317 = vunpack.c.l.b16 %v2301
          %v2318 = vpack.c.b16 %v2311, %v2310
          %v2319 = vpack.c.b16 %v2313, %v2312
          %v2320 = vpack.c.b16 %v2315, %v2314
          %v2321 = vpack.c.b16 %v2317, %v2316
          %v2327 = vsel %vm2038, %v2278, 0
          %v2330 = vsel %vm2038, %v2279, 0
          %v2333 = vsel %vm2038, %v2280, 0
          %v2336 = vsel %vm2038, %v2281, 0
          %v2339 = vsel %vm2038, %v2282, 0
          %v2342 = vsel %vm2038, %v2283, 0
          %v2345 = vsel %vm2038, %v2284, 0
          %v2348 = vsel %vm2038, %v2285, 0
          %v2351 = vsel %vm2038, %v2286, 0
          %v2354 = vsel %vm2038, %v2287, 0
          %v2357 = vsel %vm2038, %v2288, 0
          %v2360 = vsel %vm2038, %v2289, 0
          %v2363 = vsel %vm2038, %v2290, 0
          %v2366 = vsel %vm2038, %v2291, 0
          %v2369 = vsel %vm2038, %v2292, 0
          %v2372 = vsel %vm2038, %v2293, 0
          %2374 = vmatpush.bf16.msra.mxu0 0
          %2375 = vmatpush.bf16.msra.mxu0 0
          %2376 = vmatpush.bf16.msra.mxu0 0
          %2377 = vmatpush.bf16.msra.mxu0 0
          %2378 = vmatpush.bf16.msra.mxu0 %v2321
          %2379 = vmatpush.bf16.msra.mxu0 %v2320
          %2380 = vmatpush.bf16.msra.mxu0 %v2319
          %2381 = vmatpush.bf16.msra.mxu0 %v2318
          %2382 = vmatmul.bf16.gmra.mxu0 %v2327
          %v2383 = vpop.f32.mrf.mxu0
          %v2384 = vadd.f32 0.0, %v2383
          %v2385 = vpop.f32.mrf.mxu0
          %v2386 = vadd.f32 0.0, %v2385
          %2387 = vmatmul.bf16.gmra.mxu0 %v2330
          %v2388 = vpop.f32.mrf.mxu0
          %v2389 = vadd.f32 0.0, %v2388
          %v2390 = vpop.f32.mrf.mxu0
          %v2391 = vadd.f32 0.0, %v2390
          %2392 = vmatmul.bf16.gmra.mxu0 %v2333
          %v2393 = vpop.f32.mrf.mxu0
          %v2394 = vadd.f32 0.0, %v2393
          %v2395 = vpop.f32.mrf.mxu0
          %v2396 = vadd.f32 0.0, %v2395
          %2397 = vmatmul.bf16.gmra.mxu0 %v2336
          %v2398 = vpop.f32.mrf.mxu0
          %v2399 = vadd.f32 0.0, %v2398
          %v2400 = vpop.f32.mrf.mxu0
          %v2401 = vadd.f32 0.0, %v2400
          %2402 = vmatmul.bf16.gmra.mxu0 %v2339
          %v2403 = vpop.f32.mrf.mxu0
          %v2404 = vadd.f32 0.0, %v2403
          %v2405 = vpop.f32.mrf.mxu0
          %v2406 = vadd.f32 0.0, %v2405
          %2407 = vmatmul.bf16.gmra.mxu0 %v2342
          %v2408 = vpop.f32.mrf.mxu0
          %v2409 = vadd.f32 0.0, %v2408
          %v2410 = vpop.f32.mrf.mxu0
          %v2411 = vadd.f32 0.0, %v2410
          %2412 = vmatmul.bf16.gmra.mxu0 %v2345
          %v2413 = vpop.f32.mrf.mxu0
          %v2414 = vadd.f32 0.0, %v2413
          %v2415 = vpop.f32.mrf.mxu0
          %v2416 = vadd.f32 0.0, %v2415
          %2417 = vmatmul.bf16.gmra.mxu0 %v2348
          %v2418 = vpop.f32.mrf.mxu0
          %v2419 = vadd.f32 0.0, %v2418
          %v2420 = vpop.f32.mrf.mxu0
          %v2421 = vadd.f32 0.0, %v2420
          %2422 = vmatmul.bf16.gmra.mxu0 %v2351
          %v2423 = vpop.f32.mrf.mxu0
          %v2424 = vadd.f32 0.0, %v2423
          %v2425 = vpop.f32.mrf.mxu0
          %v2426 = vadd.f32 0.0, %v2425
          %2427 = vmatmul.bf16.gmra.mxu0 %v2354
          %v2428 = vpop.f32.mrf.mxu0
          %v2429 = vadd.f32 0.0, %v2428
          %v2430 = vpop.f32.mrf.mxu0
          %v2431 = vadd.f32 0.0, %v2430
          %2432 = vmatmul.bf16.gmra.mxu0 %v2357
          %v2433 = vpop.f32.mrf.mxu0
          %v2434 = vadd.f32 0.0, %v2433
          %v2435 = vpop.f32.mrf.mxu0
          %v2436 = vadd.f32 0.0, %v2435
          %2437 = vmatmul.bf16.gmra.mxu0 %v2360
          %v2438 = vpop.f32.mrf.mxu0
          %v2439 = vadd.f32 0.0, %v2438
          %v2440 = vpop.f32.mrf.mxu0
          %v2441 = vadd.f32 0.0, %v2440
          %2442 = vmatmul.bf16.gmra.mxu0 %v2363
          %v2443 = vpop.f32.mrf.mxu0
          %v2444 = vadd.f32 0.0, %v2443
          %v2445 = vpop.f32.mrf.mxu0
          %v2446 = vadd.f32 0.0, %v2445
          %2447 = vmatmul.bf16.gmra.mxu0 %v2366
          %v2448 = vpop.f32.mrf.mxu0
          %v2449 = vadd.f32 0.0, %v2448
          %v2450 = vpop.f32.mrf.mxu0
          %v2451 = vadd.f32 0.0, %v2450
          %2452 = vmatmul.bf16.gmra.mxu0 %v2369
          %v2453 = vpop.f32.mrf.mxu0
          %v2454 = vadd.f32 0.0, %v2453
          %v2455 = vpop.f32.mrf.mxu0
          %v2456 = vadd.f32 0.0, %v2455
          %2457 = vmatmul.bf16.gmra.mxu0 %v2372
          %v2458 = vpop.f32.mrf.mxu0
          %v2459 = vadd.f32 0.0, %v2458
          %v2460 = vpop.f32.mrf.mxu0
          %v2461 = vadd.f32 0.0, %v2460
          %2462 = vdwg.mxu0
          %v2463 = vsel %vm2038, %v2384, 0.0
          %v2464 = vsel %vm2038, %v2386, 0.0
          %v2465 = vadd.f32 %v2463, %v2464
          %v2466 = vsel %vm2038, %v2389, 0.0
          %v2467 = vadd.f32 %v2465, %v2466
          %v2468 = vsel %vm2038, %v2391, 0.0
          %v2469 = vadd.f32 %v2467, %v2468
          %v2470 = vsel %vm2038, %v2394, 0.0
          %v2471 = vadd.f32 %v2469, %v2470
          %v2472 = vsel %vm2038, %v2396, 0.0
          %v2473 = vadd.f32 %v2471, %v2472
          %v2474 = vsel %vm2038, %v2399, 0.0
          %v2475 = vadd.f32 %v2473, %v2474
          %v2476 = vsel %vm2038, %v2401, 0.0
          %v2477 = vadd.f32 %v2475, %v2476
          %v2478 = vsel %vm2038, %v2404, 0.0
          %v2479 = vadd.f32 %v2477, %v2478
          %v2480 = vsel %vm2038, %v2406, 0.0
          %v2481 = vadd.f32 %v2479, %v2480
          %v2482 = vsel %vm2038, %v2409, 0.0
          %v2483 = vadd.f32 %v2481, %v2482
          %v2484 = vsel %vm2038, %v2411, 0.0
          %v2485 = vadd.f32 %v2483, %v2484
          %v2486 = vsel %vm2038, %v2414, 0.0
          %v2487 = vadd.f32 %v2485, %v2486
          %v2488 = vsel %vm2038, %v2416, 0.0
          %v2489 = vadd.f32 %v2487, %v2488
          %v2490 = vsel %vm2038, %v2419, 0.0
          %v2491 = vadd.f32 %v2489, %v2490
          %v2492 = vsel %vm2038, %v2421, 0.0
          %v2493 = vadd.f32 %v2491, %v2492
          %v2494 = vsel %vm2038, %v2424, 0.0
          %v2495 = vadd.f32 %v2493, %v2494
          %v2496 = vsel %vm2038, %v2426, 0.0
          %v2497 = vadd.f32 %v2495, %v2496
          %v2498 = vsel %vm2038, %v2429, 0.0
          %v2499 = vadd.f32 %v2497, %v2498
          %v2500 = vsel %vm2038, %v2431, 0.0
          %v2501 = vadd.f32 %v2499, %v2500
          %v2502 = vsel %vm2038, %v2434, 0.0
          %v2503 = vadd.f32 %v2501, %v2502
          %v2504 = vsel %vm2038, %v2436, 0.0
          %v2505 = vadd.f32 %v2503, %v2504
          %v2506 = vsel %vm2038, %v2439, 0.0
          %v2507 = vadd.f32 %v2505, %v2506
          %v2508 = vsel %vm2038, %v2441, 0.0
          %v2509 = vadd.f32 %v2507, %v2508
          %v2510 = vsel %vm2038, %v2444, 0.0
          %v2511 = vadd.f32 %v2509, %v2510
          %v2512 = vsel %vm2038, %v2446, 0.0
          %v2513 = vadd.f32 %v2511, %v2512
          %v2514 = vsel %vm2038, %v2449, 0.0
          %v2515 = vadd.f32 %v2513, %v2514
          %v2516 = vsel %vm2038, %v2451, 0.0
          %v2517 = vadd.f32 %v2515, %v2516
          %v2518 = vsel %vm2038, %v2454, 0.0
          %v2519 = vadd.f32 %v2517, %v2518
          %v2520 = vsel %vm2038, %v2456, 0.0
          %v2521 = vadd.f32 %v2519, %v2520
          %v2522 = vsel %vm2038, %v2459, 0.0
          %v2523 = vadd.f32 %v2521, %v2522
          %v2524 = vsel %vm2038, %v2461, 0.0
          %v2525 = vadd.f32 %v2523, %v2524
          %v2526 = vrot.slane %v2525, 4
          %v2527 = vadd.f32 %v2525, %v2526
          %v2528 = vrot.slane %v2527, 2
          %v2529 = vadd.f32 %v2527, %v2528
          %v2530 = vrot.slane %v2529, 1
          %v2531 = vadd.f32 %v2529, %v2530
          %v2532 = vld [vmem:[#allocation6] sm:$0x1]
          %v2533 = vadd.f32 %v2532, %v2531
          %vm2534 = vcmask 516096
          %2535 = vst.msk [vmem:[#allocation6] sm:$0x1] %vm2534, %v2533
          %v2536 = vld [vmem:[#allocation7] sm:$0x1]
          %v2537 = vmul.f32 %v2384, %v2384
          %v2538 = vmul.f32 %v2386, %v2386
          %v2539 = vmul.f32 %v2389, %v2389
          %v2540 = vmul.f32 %v2391, %v2391
          %v2541 = vmul.f32 %v2394, %v2394
          %v2542 = vmul.f32 %v2396, %v2396
          %v2543 = vmul.f32 %v2399, %v2399
          %v2544 = vmul.f32 %v2401, %v2401
          %v2545 = vmul.f32 %v2404, %v2404
          %v2546 = vmul.f32 %v2406, %v2406
          %v2547 = vmul.f32 %v2409, %v2409
          %v2548 = vmul.f32 %v2411, %v2411
          %v2549 = vmul.f32 %v2414, %v2414
          %v2550 = vmul.f32 %v2416, %v2416
          %v2551 = vmul.f32 %v2419, %v2419
          %v2552 = vmul.f32 %v2421, %v2421
          %v2553 = vmul.f32 %v2424, %v2424
          %v2554 = vmul.f32 %v2426, %v2426
          %v2555 = vmul.f32 %v2429, %v2429
          %v2556 = vmul.f32 %v2431, %v2431
          %v2557 = vmul.f32 %v2434, %v2434
          %v2558 = vmul.f32 %v2436, %v2436
          %v2559 = vmul.f32 %v2439, %v2439
          %v2560 = vmul.f32 %v2441, %v2441
          %v2561 = vmul.f32 %v2444, %v2444
          %v2562 = vmul.f32 %v2446, %v2446
          %v2563 = vmul.f32 %v2449, %v2449
          %v2564 = vmul.f32 %v2451, %v2451
          %v2565 = vmul.f32 %v2454, %v2454
          %v2566 = vmul.f32 %v2456, %v2456
          %v2567 = vmul.f32 %v2459, %v2459
          %v2568 = vmul.f32 %v2461, %v2461
          %v2569 = vsel %vm2038, %v2537, 0.0
          %v2570 = vsel %vm2038, %v2538, 0.0
          %v2571 = vadd.f32 %v2569, %v2570
          %v2572 = vsel %vm2038, %v2539, 0.0
          %v2573 = vadd.f32 %v2571, %v2572
          %v2574 = vsel %vm2038, %v2540, 0.0
          %v2575 = vadd.f32 %v2573, %v2574
          %v2576 = vsel %vm2038, %v2541, 0.0
          %v2577 = vadd.f32 %v2575, %v2576
          %v2578 = vsel %vm2038, %v2542, 0.0
          %v2579 = vadd.f32 %v2577, %v2578
          %v2580 = vsel %vm2038, %v2543, 0.0
          %v2581 = vadd.f32 %v2579, %v2580
          %v2582 = vsel %vm2038, %v2544, 0.0
          %v2583 = vadd.f32 %v2581, %v2582
          %v2584 = vsel %vm2038, %v2545, 0.0
          %v2585 = vadd.f32 %v2583, %v2584
          %v2586 = vsel %vm2038, %v2546, 0.0
          %v2587 = vadd.f32 %v2585, %v2586
          %v2588 = vsel %vm2038, %v2547, 0.0
          %v2589 = vadd.f32 %v2587, %v2588
          %v2590 = vsel %vm2038, %v2548, 0.0
          %v2591 = vadd.f32 %v2589, %v2590
          %v2592 = vsel %vm2038, %v2549, 0.0
          %v2593 = vadd.f32 %v2591, %v2592
          %v2594 = vsel %vm2038, %v2550, 0.0
          %v2595 = vadd.f32 %v2593, %v2594
          %v2596 = vsel %vm2038, %v2551, 0.0
          %v2597 = vadd.f32 %v2595, %v2596
          %v2598 = vsel %vm2038, %v2552, 0.0
          %v2599 = vadd.f32 %v2597, %v2598
          %v2600 = vsel %vm2038, %v2553, 0.0
          %v2601 = vadd.f32 %v2599, %v2600
          %v2602 = vsel %vm2038, %v2554, 0.0
          %v2603 = vadd.f32 %v2601, %v2602
          %v2604 = vsel %vm2038, %v2555, 0.0
          %v2605 = vadd.f32 %v2603, %v2604
          %v2606 = vsel %vm2038, %v2556, 0.0
          %v2607 = vadd.f32 %v2605, %v2606
          %v2608 = vsel %vm2038, %v2557, 0.0
          %v2609 = vadd.f32 %v2607, %v2608
          %v2610 = vsel %vm2038, %v2558, 0.0
          %v2611 = vadd.f32 %v2609, %v2610
          %v2612 = vsel %vm2038, %v2559, 0.0
          %v2613 = vadd.f32 %v2611, %v2612
          %v2614 = vsel %vm2038, %v2560, 0.0
          %v2615 = vadd.f32 %v2613, %v2614
          %v2616 = vsel %vm2038, %v2561, 0.0
          %v2617 = vadd.f32 %v2615, %v2616
          %v2618 = vsel %vm2038, %v2562, 0.0
          %v2619 = vadd.f32 %v2617, %v2618
          %v2620 = vsel %vm2038, %v2563, 0.0
          %v2621 = vadd.f32 %v2619, %v2620
          %v2622 = vsel %vm2038, %v2564, 0.0
          %v2623 = vadd.f32 %v2621, %v2622
          %v2624 = vsel %vm2038, %v2565, 0.0
          %v2625 = vadd.f32 %v2623, %v2624
          %v2626 = vsel %vm2038, %v2566, 0.0
          %v2627 = vadd.f32 %v2625, %v2626
          %v2628 = vsel %vm2038, %v2567, 0.0
          %v2629 = vadd.f32 %v2627, %v2628
          %v2630 = vsel %vm2038, %v2568, 0.0
          %v2631 = vadd.f32 %v2629, %v2630
          %v2632 = vrot.slane %v2631, 4
          %v2633 = vadd.f32 %v2631, %v2632
          %v2634 = vrot.slane %v2633, 2
          %v2635 = vadd.f32 %v2633, %v2634
          %v2636 = vrot.slane %v2635, 1
          %v2637 = vadd.f32 %v2635, %v2636
          %v2638 = vadd.f32 %v2536, %v2637
          %2639 = vst.msk [vmem:[#allocation7] sm:$0x1] %vm2534, %v2638
          %v2640 = vlaneseq
          %v2641 = vshrl.u32 %v2640, 7
          %v2642 = vstv %s29
          %vm2643 = vcmp.eq.s32.totalorder %v2641, %v2642
          %v2644 = vsel %vm2643, 1, 0
          %v2645 = vcvt.s32.f32 %v2644
          %v2646 = vld [vmem:[#allocation8] sm:$0x3]
          %v2647 = vmul.f32 %v2645, %v2531
          %v2648 = vadd.f32 %v2646, %v2647
          %vm2649 = vcmask 517120
          %2650 = vst.msk [vmem:[#allocation8] sm:$0x3] %vm2649, %v2648
          // Predicated region
          $region89: #{tpu_custom_call.1} parent=83 // pred_check
            _
          $region90: #{tpu_custom_call.1} parent=83 // pred_check_branch
            %2652 = sbr.rel (%p414) target = $region92
          $region91: #{tpu_custom_call.1} parent=83 // pred_region
            %v2653 = vld [vmem:[#allocation6] sm:$0x1]
            %v2654 = vmul.f32 %v2653, 0.001953125
            %v2655 = vld [vmem:[#allocation7] sm:$0x1]
            %v2656 = vmul.f32 %v2655, 0.001953125
            %v2657 = vmul.f32 %v2654, %v2654
            %v2658 = vsub.f32 %v2656, %v2657
            %v2659 = vadd.f32 %v2658, 1e-05
            %v2660 = vrsqrt.pop %v2659
            %v2661 = vmul.f32 %v2660, %v2659
            %v2662 = vmul.f32 %v2661, %v2660
            %v2663 = vmul.f32 0.5, %v2662
            %v2664 = vsub.f32 1.5, %v2663
            %v2665 = vmul.f32 %v2660, %v2664
            %vm2666 = vweird.f32 %v2659
            %vm2667 = vweird.f32 %v2660
            %vm2668 = vmor %vm2666, %vm2667
            %v2669 = vsel %vm2668, %v2660, %v2665
            %v2670 = vld [vmem:[%s8] sm:$0x1]
            %v2671 = vmul.f32 %v2670, %v2669
            %v2672 = vld [vmem:[%s9] sm:$0x1]
            %v2673 = vmul.f32 %v2654, %v2671
            %v2674 = vsub.f32 %v2672, %v2673
            %v2675 = vld [vmem:[#allocation8] sm:$0x3]
            %v2676 = vmul.f32 %v2675, 0.00390625
            %v2678 = vperm.slane %v2671, 0
            %v2680 = vmul.f32 %v2676, %v2678
            %v2682 = vperm.slane %v2674, 0
            %v2684 = vadd.f32 %v2680, %v2682
            %v2685 = vpack.c.bf16 %v2684, %v2684
            %v2686 = vld [vmem:[%s10] sm:$0xf]
            %v2687 = vld [vmem:[%s10 + $0x4] sm:$0xf]
            %v2688 = vld [vmem:[%s10 + $0x8] sm:$0xf]
            %v2689 = vld [vmem:[%s10 + $0xc] sm:$0xf]
            %v2690 = vld [vmem:[%s10 + $0x10] sm:$0xf]
            %v2691 = vld [vmem:[%s10 + $0x14] sm:$0xf]
            %v2692 = vld [vmem:[%s10 + $0x18] sm:$0xf]
            %v2693 = vld [vmem:[%s10 + $0x1c] sm:$0xf]
            %v2702 = vunpack.c.l.b16 %v2686
            %v2703 = vunpack.c.l.b16 %v2687
            %v2704 = vunpack.c.l.b16 %v2688
            %v2705 = vunpack.c.l.b16 %v2689
            %v2706 = vunpack.c.l.b16 %v2690
            %v2707 = vunpack.c.l.b16 %v2691
            %v2708 = vunpack.c.l.b16 %v2692
            %v2709 = vunpack.c.l.b16 %v2693
            %v2710 = vpack.c.b16 %v2703, %v2702
            %v2711 = vpack.c.b16 %v2705, %v2704
            %v2712 = vpack.c.b16 %v2707, %v2706
            %v2713 = vpack.c.b16 %v2709, %v2708
            %v2719 = vsel %vm2038, %v2685, 0
            %2721 = vmatpush.bf16.msra.mxu0 0
            %2722 = vmatpush.bf16.msra.mxu0 0
            %2723 = vmatpush.bf16.msra.mxu0 0
            %2724 = vmatpush.bf16.msra.mxu0 0
            %2725 = vmatpush.bf16.msra.mxu0 %v2713
            %2726 = vmatpush.bf16.msra.mxu0 %v2712
            %2727 = vmatpush.bf16.msra.mxu0 %v2711
            %2728 = vmatpush.bf16.msra.mxu0 %v2710
            %2729 = vmatmul.bf16.gmra.mxu0 %v2719
            %v2730 = vpop.f32.mrf.mxu0
            %v2731 = vadd.f32 0.0, %v2730
            %v2732 = vpop.f32.mrf.mxu0
            %2733 = vdwg.mxu0
            %v2734 = vsub.f32 1.0, %v2731
            %2736 = vrot.lane.b32.xlu0 %v2731, 1
            %v2737 = vpop.permute.xlu0 %2736
            %vm2739 = vcmask 7168
            %v2740 = vsel %vm2739, %v2734, %v2737
            %vm2741 = vcmask 9216
            %2742 = vst.msk [vmem:[#allocation9] sm:$0x3] %vm2741, %v2740
          $region92: #{tpu_custom_call.1} parent=83 // pred_fallthru
            _
        $region84: #{tpu_custom_call.1} parent=63 // pred_fallthru
          _
        // Predicated region
        $region93: #{tpu_custom_call.1} parent=63 // pred_check
          %p2743 = pneg %p293
        $region94: #{tpu_custom_call.1} parent=63 // pred_check_branch
          %2745 = sbr.rel (%p2743) target = $region96
        $region95: #{tpu_custom_call.1} parent=63 // pred_region
          %2747 = vsyncadd [#allocation10], 0
          %s2749 = sshll.u32 [#allocation9], 4
          %s2750 = int_to_ptr.vmem [resolvable:$true] %s2749
          %s2751 = sshll.u32 %s11, 4
          %s2752 = int_to_ptr.hbm [resolvable:$true] %s2751
          %2754 = dma.vmem_to_hbm [thread:$0]  %s2750, 32, %s2752, [#allocation10]
        $region96: #{tpu_custom_call.1} parent=63 // pred_fallthru
          _
        // Predicated region
        $region97: #{tpu_custom_call.1} parent=63 // pred_check
          %p2755 = pneg %p293
        $region98: #{tpu_custom_call.1} parent=63 // pred_check_branch
          %2757 = sbr.rel (%p2755) target = $region100
        $region99: #{tpu_custom_call.1} parent=63 // pred_region
          %2759 = dma.done [#allocation10], 32
        $region100: #{tpu_custom_call.1} parent=63 // pred_fallthru
          _
      $region64: #{tpu_custom_call.1} parent=5 // pred_fallthru
        _
      %p2760 = scmp.le.s32.totalorder 2, %s18
      // Predicated region
      $region101: #{tpu_custom_call.1} parent=5 // pred_check
        %p2761 = pneg %p2760
      $region102: #{tpu_custom_call.1} parent=5 // pred_check_branch
        %2763 = sbr.rel (%p2761) target = $region104
      $region103: #{tpu_custom_call.1} parent=5 // pred_region
        %s2764 = ssub.s32 %s18, 2
      $region104: #{tpu_custom_call.1} parent=5 // pred_fallthru
        _
    $region6: #{tpu_custom_call.1} parent=1 // loop_footer
      %s22 = sadd.s32 1, %s18
    $region7: #{tpu_custom_call.1} parent=1 // loop_footer_branch
      %17 = sbr.rel target = $region3
    $region8: #{tpu_custom_call.1} parent=1 // loop_exit
      _
    %2765 = vsyncpa [#allocation10], 1
    %s2766 = scalar_lea.sflag [#allocation10], 1
    %2767 = vsyncpa %s2766, 1

</llo_original>
